<compile_context>
chip_gen: v7x
topology: tpu7x:2x2x1
jax: 0.10.0
libtpu: 0.0.40
codegen_flags: <defaults>
</compile_context>

<pallas_src>
import jax
import jax.numpy as jnp
from jax import lax
from jax.experimental import pallas as pl
from jax.experimental.pallas import tpu as pltpu


def lstm_kernel(xp_ref, wbig_ref, b1_ref, wfc_ref, bfc_ref, out_ref):
    # xp_ref  : (S, Bp, 8H) f32  packed additive term, time-major.  Per gate pair g:
    #             layer-0 half = x(t) @ Wih0[g]^T + bih0[g] + bhh0[g]
    #             layer-1 half = bih1[g] + bhh1[g]   (zeros at t == 0)
    # wbig_ref: (2H, 8H) bf16    packed recurrent weights  [[Whh0^T, Wih1^T], [0, Whh1^T]] per gate
    # b1_ref  : (1, 8H) f32      layer-1 bias in the layer-1 halves (epilogue only)
    # wfc_ref : (1, 2H) f32      fc weights packed as [0 ... 0 | wfc]
    # bfc_ref : (1, 1) f32       fc bias (SMEM scalar)
    # out_ref : (Bp, 1) f32
    S, Bp, G8 = xp_ref.shape
    H2 = G8 // 4                      # packed state width = 2 * hidden_dim (128 lanes)
    f32 = jnp.float32

    def sig(x):                       # single-transcendental sigmoid (one EUP tanh + VPU fma)
        return 0.5 * jnp.tanh(0.5 * x) + 0.5

    def gate_act(gates, c_prev):
        # Each gate pair is 128-lane aligned: these slices are free vreg extracts.
        i = sig(gates[:, 0 * H2:1 * H2])
        f = sig(gates[:, 1 * H2:2 * H2])
        g = jnp.tanh(gates[:, 2 * H2:3 * H2])
        o = sig(gates[:, 3 * H2:4 * H2])
        c_new = f * c_prev + i * g
        h_new = o * jnp.tanh(c_new)
        return h_new, c_new

    def fused_gates(hcat):
        # Read the RHS ref at the point of use (no hoisted 128 KiB value); bf16 in, f32 out.
        return jnp.dot(hcat.astype(jnp.bfloat16), wbig_ref[...],
                       preferred_element_type=f32)

    zeros = jnp.zeros((Bp, H2), f32)

    # Prologue: layer 0 at t = 0.  xp[0]'s layer-1 halves are zero, so the layer-1 half of the
    # packed state provably comes out as h = c = 0  (sigmoid(0) * tanh(0) = 0).
    hcat, ccat = gate_act(xp_ref[0], zeros)       # -> [h1(0) | 0], [c1(0) | 0]

    def body(t, carry):
        # Carry is the pipelined packed state [h1(t) | h2(t-1)], [c1(t) | c2(t-1)].
        hcat, ccat = carry
        gates = fused_gates(hcat) + xp_ref[t + 1]
        return gate_act(gates, ccat)              # -> [h1(t+1) | h2(t)], [c1(t+1) | c2(t)]

    hcat, ccat = lax.fori_loop(0, S - 1, body, (hcat, ccat), unroll=True)

    # Epilogue: layer 1 at the last timestep (the layer-0 half of the result is discarded), then
    # the fc head as a VPU multiply + XLU lane reduction (no MXU push for a 1-column RHS).
    gates = fused_gates(hcat) + b1_ref[...]
    hcat, _ = gate_act(gates, ccat)               # layer-1 half = h2(S-1)
    out_ref[...] = (jnp.sum(hcat * wfc_ref[...], axis=-1, keepdims=True)
                    + bfc_ref[0, 0])


def lstm_price_predictor(x, params):
    """x: (batch, seq, input_dim) float32 -> (batch, 1) float32."""
    B, S, D_in = x.shape
    H = params["whh0"].shape[1]                   # weight_hh_l0 has shape (4H, H)
    Bp = ((B + 7) // 8) * 8                       # pad batch to the 8-sublane granule
    f32, bf16 = jnp.float32, jnp.bfloat16

    # --- packed recurrent weights:  [h1 | h2] @ wbig -> [i0|i1, f0|f1, g0|g1, o0|o1] ---
    whh0, wih1, whh1 = params["whh0"], params["wih1"], params["whh1"]
    blocks = []
    for g in range(4):
        top = jnp.concatenate([whh0[g * H:(g + 1) * H].T, wih1[g * H:(g + 1) * H].T], axis=1)
        bot = jnp.concatenate([jnp.zeros((H, H), f32), whh1[g * H:(g + 1) * H].T], axis=1)
        blocks.append(jnp.concatenate([top, bot], axis=0))                       # (2H, 2H)
    wbig = jnp.concatenate(blocks, axis=1).astype(bf16)                          # (2H, 8H) bf16

    # --- packed per-timestep additive term (layer-0 input projection + both biases), time-major ---
    b0 = (params["bih0"] + params["bhh0"]).reshape(4, H)
    b1 = (params["bih1"] + params["bhh1"]).reshape(4, H)
    proj = jnp.einsum("bsd,gd->sbg", x.astype(f32), params["wih0"])              # (S, B, 4H)
    proj = proj.reshape(S, B, 4, H) + b0                                         # layer-0 halves
    t_mask = (jnp.arange(S) > 0).astype(f32)[:, None, None, None]                # zero at t = 0
    l1 = jnp.broadcast_to(b1[None, None] * t_mask, (S, B, 4, H))                 # layer-1 halves
    xp = jnp.stack([proj, l1], axis=3).reshape(S, B, 8 * H)                      # (S, B, 8H)
    xp = jnp.pad(xp, ((0, 0), (0, Bp - B), (0, 0)))                              # (S, Bp, 8H)

    # --- epilogue layer-1 bias, fc weights packed as [0 | wfc], fc bias as SMEM scalar ---
    b1_packed = jnp.stack([jnp.zeros((4, H), f32), b1], axis=1).reshape(1, 8 * H)
    wfc_packed = jnp.concatenate([jnp.zeros((1, H), f32), params["wfc"]], axis=1)  # (1, 2H)
    bfc = params["bfc"].reshape(1, 1)

    vmem = pl.BlockSpec(memory_space=pltpu.MemorySpace.VMEM)
    smem = pl.BlockSpec(memory_space=pltpu.MemorySpace.SMEM)
    out = pl.pallas_call(
        lstm_kernel,
        out_shape=jax.ShapeDtypeStruct((Bp, 1), f32),
        in_specs=[vmem, vmem, vmem, vmem, smem],
        out_specs=pl.BlockSpec(memory_space=pltpu.MemorySpace.VMEM),
    )(xp, wbig, b1_packed, wfc_packed, bfc)
    return out[:B]


def lstm_ref(x, params):
    """Pure-JAX f32 reference with identical semantics (for validation)."""
    B, S, D_in = x.shape
    H = params["whh0"].shape[1]

    def run_layer(inp, wih, whh, bih, bhh):
        def step(carry, x_t):
            h, c = carry
            gates = x_t @ wih.T + bih + h @ whh.T + bhh
            i = jax.nn.sigmoid(gates[:, 0 * H:1 * H])
            f = jax.nn.sigmoid(gates[:, 1 * H:2 * H])
            g = jnp.tanh(gates[:, 2 * H:3 * H])
            o = jax.nn.sigmoid(gates[:, 3 * H:4 * H])
            c_new = f * c + i * g
            h_new = o * jnp.tanh(c_new)
            return (h_new, c_new), h_new

        init = (jnp.zeros((B, H), jnp.float32), jnp.zeros((B, H), jnp.float32))
        _, hs = lax.scan(step, init, jnp.transpose(inp, (1, 0, 2)))
        return jnp.transpose(hs, (1, 0, 2))  # (B, S, H)

    out0 = run_layer(x, params["wih0"], params["whh0"], params["bih0"], params["bhh0"])
    out1 = run_layer(out0, params["wih1"], params["whh1"], params["bih1"], params["bhh1"])
    return out1[:, -1, :] @ params["wfc"].T + params["bfc"]


def init_params(key, input_dim=1, hidden_dim=64):
    H = hidden_dim
    ks = jax.random.split(key, 10)
    scale = 1.0 / jnp.sqrt(H)
    u = lambda k, shape: jax.random.uniform(k, shape, jnp.float32, -scale, scale)
    return {
        "wih0": u(ks[0], (4 * H, input_dim)),
        "whh0": u(ks[1], (4 * H, H)),
        "bih0": u(ks[2], (4 * H,)),
        "bhh0": u(ks[3], (4 * H,)),
        "wih1": u(ks[4], (4 * H, H)),
        "whh1": u(ks[5], (4 * H, H)),
        "bih1": u(ks[6], (4 * H,)),
        "bhh1": u(ks[7], (4 * H,)),
        "wfc": u(ks[8], (1, H)),
        "bfc": u(ks[9], (1,)),
    }


if __name__ == "__main__":
    B, S, D_in, H = 2, 8, 1, 64  # module defaults: input_dim=1, hidden_dim=64, num_layers=2

    key = jax.random.PRNGKey(0)
    kx, kp = jax.random.split(key)
    x = jax.random.normal(kx, (B, S, D_in), dtype=jnp.float32)
    params = init_params(kp, input_dim=D_in, hidden_dim=H)

    out = lstm_price_predictor(x, params)
    out = jax.block_until_ready(out)

    ref = lstm_ref(x, params)
    assert out.shape == (B, 1), out.shape
    # bf16 matmul operands in the recurrence -> looser tolerance than the pure-f32 reference.
    assert jnp.allclose(out, ref, atol=2e-2, rtol=2e-2), (out, ref)

    print("KERNEL_OK")
</pallas_src>

<mosaic_0001>
module attributes {stable_mosaic.version = 11 : i64} {
  func.func @lstm_kernel(%arg0: memref<8x8x512xf32, #tpu.memory_space<vmem>>, %arg1: memref<128x512xbf16, #tpu.memory_space<vmem>>, %arg2: memref<1x512xf32, #tpu.memory_space<vmem>>, %arg3: memref<1x128xf32, #tpu.memory_space<vmem>>, %arg4: memref<1x1xf32, #tpu.memory_space<smem>>, %arg5: memref<8x1xf32, #tpu.memory_space<vmem>>) attributes {dimension_semantics = [], scalar_prefetch = 0 : i64, scratch_operands = 0 : i64, tpu.core_type = #tpu.core_type<tc>} {
    %cst = arith.constant 0.000000e+00 : f32
    %0 = vector.broadcast %cst : f32 to vector<8x128xf32>
    %c0 = arith.constant 0 : index
    %c0_0 = arith.constant 0 : index
    %c0_1 = arith.constant 0 : index
    %1 = vector.load %arg0[%c0, %c0_0, %c0_1] : memref<8x8x512xf32, #tpu.memory_space<vmem>>, vector<1x8x512xf32>
    %2 = vector.shape_cast %1 : vector<1x8x512xf32> to vector<8x512xf32>
    %3 = vector.extract_strided_slice %2 {offsets = [0, 0], sizes = [8, 128], strides = [1, 1]} : vector<8x512xf32> to vector<8x128xf32>
    %cst_2 = arith.constant 5.000000e-01 : f32
    %4 = vector.broadcast %cst_2 : f32 to vector<8x128xf32>
    %5 = arith.mulf %4, %3 : vector<8x128xf32>
    %6 = math.tanh %5 : vector<8x128xf32>
    %cst_3 = arith.constant 5.000000e-01 : f32
    %7 = vector.broadcast %cst_3 : f32 to vector<8x128xf32>
    %8 = arith.mulf %7, %6 : vector<8x128xf32>
    %cst_4 = arith.constant 5.000000e-01 : f32
    %9 = vector.broadcast %cst_4 : f32 to vector<8x128xf32>
    %10 = arith.addf %8, %9 : vector<8x128xf32>
    %11 = vector.extract_strided_slice %2 {offsets = [0, 128], sizes = [8, 128], strides = [1, 1]} : vector<8x512xf32> to vector<8x128xf32>
    %cst_5 = arith.constant 5.000000e-01 : f32
    %12 = vector.broadcast %cst_5 : f32 to vector<8x128xf32>
    %13 = arith.mulf %12, %11 : vector<8x128xf32>
    %14 = math.tanh %13 : vector<8x128xf32>
    %cst_6 = arith.constant 5.000000e-01 : f32
    %15 = vector.broadcast %cst_6 : f32 to vector<8x128xf32>
    %16 = arith.mulf %15, %14 : vector<8x128xf32>
    %cst_7 = arith.constant 5.000000e-01 : f32
    %17 = vector.broadcast %cst_7 : f32 to vector<8x128xf32>
    %18 = arith.addf %16, %17 : vector<8x128xf32>
    %19 = vector.extract_strided_slice %2 {offsets = [0, 256], sizes = [8, 128], strides = [1, 1]} : vector<8x512xf32> to vector<8x128xf32>
    %20 = math.tanh %19 : vector<8x128xf32>
    %21 = vector.extract_strided_slice %2 {offsets = [0, 384], sizes = [8, 128], strides = [1, 1]} : vector<8x512xf32> to vector<8x128xf32>
    %cst_8 = arith.constant 5.000000e-01 : f32
    %22 = vector.broadcast %cst_8 : f32 to vector<8x128xf32>
    %23 = arith.mulf %22, %21 : vector<8x128xf32>
    %24 = math.tanh %23 : vector<8x128xf32>
    %cst_9 = arith.constant 5.000000e-01 : f32
    %25 = vector.broadcast %cst_9 : f32 to vector<8x128xf32>
    %26 = arith.mulf %25, %24 : vector<8x128xf32>
    %cst_10 = arith.constant 5.000000e-01 : f32
    %27 = vector.broadcast %cst_10 : f32 to vector<8x128xf32>
    %28 = arith.addf %26, %27 : vector<8x128xf32>
    %29 = arith.mulf %18, %0 : vector<8x128xf32>
    %30 = arith.mulf %10, %20 : vector<8x128xf32>
    %31 = arith.addf %29, %30 : vector<8x128xf32>
    %32 = math.tanh %31 : vector<8x128xf32>
    %33 = arith.mulf %28, %32 : vector<8x128xf32>
    %c0_i32 = arith.constant 0 : i32
    %34 = arith.truncf %33 : vector<8x128xf32> to vector<8x128xbf16>
    %c0_11 = arith.constant 0 : index
    %c0_12 = arith.constant 0 : index
    %35 = vector.load %arg1[%c0_11, %c0_12] : memref<128x512xbf16, #tpu.memory_space<vmem>>, vector<128x512xbf16>
    %cst_13 = arith.constant dense<0.000000e+00> : vector<8x512xf32>
    %36 = tpu.matmul %34, %35, %cst_13 {dimension_numbers = #tpu.dot_dimension_numbers<[1], [0], [0], [1], [0, 0, 1, 1], [], []>} : vector<8x128xbf16>, vector<128x512xbf16>, vector<8x512xf32> -> vector<8x512xf32>
    %c1_i32 = arith.constant 1 : i32
    %37 = arith.addi %c0_i32, %c1_i32 : i32
    %38 = arith.index_cast %37 : i32 to index
    %c0_14 = arith.constant 0 : index
    %c0_15 = arith.constant 0 : index
    %39 = vector.load %arg0[%38, %c0_14, %c0_15] : memref<8x8x512xf32, #tpu.memory_space<vmem>>, vector<1x8x512xf32>
    %40 = vector.shape_cast %39 : vector<1x8x512xf32> to vector<8x512xf32>
    %41 = arith.addf %36, %40 : vector<8x512xf32>
    %42 = vector.extract_strided_slice %41 {offsets = [0, 0], sizes = [8, 128], strides = [1, 1]} : vector<8x512xf32> to vector<8x128xf32>
    %cst_16 = arith.constant 5.000000e-01 : f32
    %43 = vector.broadcast %cst_16 : f32 to vector<8x128xf32>
    %44 = arith.mulf %43, %42 : vector<8x128xf32>
    %45 = math.tanh %44 : vector<8x128xf32>
    %cst_17 = arith.constant 5.000000e-01 : f32
    %46 = vector.broadcast %cst_17 : f32 to vector<8x128xf32>
    %47 = arith.mulf %46, %45 : vector<8x128xf32>
    %cst_18 = arith.constant 5.000000e-01 : f32
    %48 = vector.broadcast %cst_18 : f32 to vector<8x128xf32>
    %49 = arith.addf %47, %48 : vector<8x128xf32>
    %50 = vector.extract_strided_slice %41 {offsets = [0, 128], sizes = [8, 128], strides = [1, 1]} : vector<8x512xf32> to vector<8x128xf32>
    %cst_19 = arith.constant 5.000000e-01 : f32
    %51 = vector.broadcast %cst_19 : f32 to vector<8x128xf32>
    %52 = arith.mulf %51, %50 : vector<8x128xf32>
    %53 = math.tanh %52 : vector<8x128xf32>
    %cst_20 = arith.constant 5.000000e-01 : f32
    %54 = vector.broadcast %cst_20 : f32 to vector<8x128xf32>
    %55 = arith.mulf %54, %53 : vector<8x128xf32>
    %cst_21 = arith.constant 5.000000e-01 : f32
    %56 = vector.broadcast %cst_21 : f32 to vector<8x128xf32>
    %57 = arith.addf %55, %56 : vector<8x128xf32>
    %58 = vector.extract_strided_slice %41 {offsets = [0, 256], sizes = [8, 128], strides = [1, 1]} : vector<8x512xf32> to vector<8x128xf32>
    %59 = math.tanh %58 : vector<8x128xf32>
    %60 = vector.extract_strided_slice %41 {offsets = [0, 384], sizes = [8, 128], strides = [1, 1]} : vector<8x512xf32> to vector<8x128xf32>
    %cst_22 = arith.constant 5.000000e-01 : f32
    %61 = vector.broadcast %cst_22 : f32 to vector<8x128xf32>
    %62 = arith.mulf %61, %60 : vector<8x128xf32>
    %63 = math.tanh %62 : vector<8x128xf32>
    %cst_23 = arith.constant 5.000000e-01 : f32
    %64 = vector.broadcast %cst_23 : f32 to vector<8x128xf32>
    %65 = arith.mulf %64, %63 : vector<8x128xf32>
    %cst_24 = arith.constant 5.000000e-01 : f32
    %66 = vector.broadcast %cst_24 : f32 to vector<8x128xf32>
    %67 = arith.addf %65, %66 : vector<8x128xf32>
    %68 = arith.mulf %57, %31 : vector<8x128xf32>
    %69 = arith.mulf %49, %59 : vector<8x128xf32>
    %70 = arith.addf %68, %69 : vector<8x128xf32>
    %71 = math.tanh %70 : vector<8x128xf32>
    %72 = arith.mulf %67, %71 : vector<8x128xf32>
    %c1_i32_25 = arith.constant 1 : i32
    %73 = arith.truncf %72 : vector<8x128xf32> to vector<8x128xbf16>
    %c0_26 = arith.constant 0 : index
    %c0_27 = arith.constant 0 : index
    %74 = vector.load %arg1[%c0_26, %c0_27] : memref<128x512xbf16, #tpu.memory_space<vmem>>, vector<128x512xbf16>
    %cst_28 = arith.constant dense<0.000000e+00> : vector<8x512xf32>
    %75 = tpu.matmul %73, %74, %cst_28 {dimension_numbers = #tpu.dot_dimension_numbers<[1], [0], [0], [1], [0, 0, 1, 1], [], []>} : vector<8x128xbf16>, vector<128x512xbf16>, vector<8x512xf32> -> vector<8x512xf32>
    %c1_i32_29 = arith.constant 1 : i32
    %76 = arith.addi %c1_i32_25, %c1_i32_29 : i32
    %77 = arith.index_cast %76 : i32 to index
    %c0_30 = arith.constant 0 : index
    %c0_31 = arith.constant 0 : index
    %78 = vector.load %arg0[%77, %c0_30, %c0_31] : memref<8x8x512xf32, #tpu.memory_space<vmem>>, vector<1x8x512xf32>
    %79 = vector.shape_cast %78 : vector<1x8x512xf32> to vector<8x512xf32>
    %80 = arith.addf %75, %79 : vector<8x512xf32>
    %81 = vector.extract_strided_slice %80 {offsets = [0, 0], sizes = [8, 128], strides = [1, 1]} : vector<8x512xf32> to vector<8x128xf32>
    %cst_32 = arith.constant 5.000000e-01 : f32
    %82 = vector.broadcast %cst_32 : f32 to vector<8x128xf32>
    %83 = arith.mulf %82, %81 : vector<8x128xf32>
    %84 = math.tanh %83 : vector<8x128xf32>
    %cst_33 = arith.constant 5.000000e-01 : f32
    %85 = vector.broadcast %cst_33 : f32 to vector<8x128xf32>
    %86 = arith.mulf %85, %84 : vector<8x128xf32>
    %cst_34 = arith.constant 5.000000e-01 : f32
    %87 = vector.broadcast %cst_34 : f32 to vector<8x128xf32>
    %88 = arith.addf %86, %87 : vector<8x128xf32>
    %89 = vector.extract_strided_slice %80 {offsets = [0, 128], sizes = [8, 128], strides = [1, 1]} : vector<8x512xf32> to vector<8x128xf32>
    %cst_35 = arith.constant 5.000000e-01 : f32
    %90 = vector.broadcast %cst_35 : f32 to vector<8x128xf32>
    %91 = arith.mulf %90, %89 : vector<8x128xf32>
    %92 = math.tanh %91 : vector<8x128xf32>
    %cst_36 = arith.constant 5.000000e-01 : f32
    %93 = vector.broadcast %cst_36 : f32 to vector<8x128xf32>
    %94 = arith.mulf %93, %92 : vector<8x128xf32>
    %cst_37 = arith.constant 5.000000e-01 : f32
    %95 = vector.broadcast %cst_37 : f32 to vector<8x128xf32>
    %96 = arith.addf %94, %95 : vector<8x128xf32>
    %97 = vector.extract_strided_slice %80 {offsets = [0, 256], sizes = [8, 128], strides = [1, 1]} : vector<8x512xf32> to vector<8x128xf32>
    %98 = math.tanh %97 : vector<8x128xf32>
    %99 = vector.extract_strided_slice %80 {offsets = [0, 384], sizes = [8, 128], strides = [1, 1]} : vector<8x512xf32> to vector<8x128xf32>
    %cst_38 = arith.constant 5.000000e-01 : f32
    %100 = vector.broadcast %cst_38 : f32 to vector<8x128xf32>
    %101 = arith.mulf %100, %99 : vector<8x128xf32>
    %102 = math.tanh %101 : vector<8x128xf32>
    %cst_39 = arith.constant 5.000000e-01 : f32
    %103 = vector.broadcast %cst_39 : f32 to vector<8x128xf32>
    %104 = arith.mulf %103, %102 : vector<8x128xf32>
    %cst_40 = arith.constant 5.000000e-01 : f32
    %105 = vector.broadcast %cst_40 : f32 to vector<8x128xf32>
    %106 = arith.addf %104, %105 : vector<8x128xf32>
    %107 = arith.mulf %96, %70 : vector<8x128xf32>
    %108 = arith.mulf %88, %98 : vector<8x128xf32>
    %109 = arith.addf %107, %108 : vector<8x128xf32>
    %110 = math.tanh %109 : vector<8x128xf32>
    %111 = arith.mulf %106, %110 : vector<8x128xf32>
    %c2_i32 = arith.constant 2 : i32
    %112 = arith.truncf %111 : vector<8x128xf32> to vector<8x128xbf16>
    %c0_41 = arith.constant 0 : index
    %c0_42 = arith.constant 0 : index
    %113 = vector.load %arg1[%c0_41, %c0_42] : memref<128x512xbf16, #tpu.memory_space<vmem>>, vector<128x512xbf16>
    %cst_43 = arith.constant dense<0.000000e+00> : vector<8x512xf32>
    %114 = tpu.matmul %112, %113, %cst_43 {dimension_numbers = #tpu.dot_dimension_numbers<[1], [0], [0], [1], [0, 0, 1, 1], [], []>} : vector<8x128xbf16>, vector<128x512xbf16>, vector<8x512xf32> -> vector<8x512xf32>
    %c1_i32_44 = arith.constant 1 : i32
    %115 = arith.addi %c2_i32, %c1_i32_44 : i32
    %116 = arith.index_cast %115 : i32 to index
    %c0_45 = arith.constant 0 : index
    %c0_46 = arith.constant 0 : index
    %117 = vector.load %arg0[%116, %c0_45, %c0_46] : memref<8x8x512xf32, #tpu.memory_space<vmem>>, vector<1x8x512xf32>
    %118 = vector.shape_cast %117 : vector<1x8x512xf32> to vector<8x512xf32>
    %119 = arith.addf %114, %118 : vector<8x512xf32>
    %120 = vector.extract_strided_slice %119 {offsets = [0, 0], sizes = [8, 128], strides = [1, 1]} : vector<8x512xf32> to vector<8x128xf32>
    %cst_47 = arith.constant 5.000000e-01 : f32
    %121 = vector.broadcast %cst_47 : f32 to vector<8x128xf32>
    %122 = arith.mulf %121, %120 : vector<8x128xf32>
    %123 = math.tanh %122 : vector<8x128xf32>
    %cst_48 = arith.constant 5.000000e-01 : f32
    %124 = vector.broadcast %cst_48 : f32 to vector<8x128xf32>
    %125 = arith.mulf %124, %123 : vector<8x128xf32>
    %cst_49 = arith.constant 5.000000e-01 : f32
    %126 = vector.broadcast %cst_49 : f32 to vector<8x128xf32>
    %127 = arith.addf %125, %126 : vector<8x128xf32>
    %128 = vector.extract_strided_slice %119 {offsets = [0, 128], sizes = [8, 128], strides = [1, 1]} : vector<8x512xf32> to vector<8x128xf32>
    %cst_50 = arith.constant 5.000000e-01 : f32
    %129 = vector.broadcast %cst_50 : f32 to vector<8x128xf32>
    %130 = arith.mulf %129, %128 : vector<8x128xf32>
    %131 = math.tanh %130 : vector<8x128xf32>
    %cst_51 = arith.constant 5.000000e-01 : f32
    %132 = vector.broadcast %cst_51 : f32 to vector<8x128xf32>
    %133 = arith.mulf %132, %131 : vector<8x128xf32>
    %cst_52 = arith.constant 5.000000e-01 : f32
    %134 = vector.broadcast %cst_52 : f32 to vector<8x128xf32>
    %135 = arith.addf %133, %134 : vector<8x128xf32>
    %136 = vector.extract_strided_slice %119 {offsets = [0, 256], sizes = [8, 128], strides = [1, 1]} : vector<8x512xf32> to vector<8x128xf32>
    %137 = math.tanh %136 : vector<8x128xf32>
    %138 = vector.extract_strided_slice %119 {offsets = [0, 384], sizes = [8, 128], strides = [1, 1]} : vector<8x512xf32> to vector<8x128xf32>
    %cst_53 = arith.constant 5.000000e-01 : f32
    %139 = vector.broadcast %cst_53 : f32 to vector<8x128xf32>
    %140 = arith.mulf %139, %138 : vector<8x128xf32>
    %141 = math.tanh %140 : vector<8x128xf32>
    %cst_54 = arith.constant 5.000000e-01 : f32
    %142 = vector.broadcast %cst_54 : f32 to vector<8x128xf32>
    %143 = arith.mulf %142, %141 : vector<8x128xf32>
    %cst_55 = arith.constant 5.000000e-01 : f32
    %144 = vector.broadcast %cst_55 : f32 to vector<8x128xf32>
    %145 = arith.addf %143, %144 : vector<8x128xf32>
    %146 = arith.mulf %135, %109 : vector<8x128xf32>
    %147 = arith.mulf %127, %137 : vector<8x128xf32>
    %148 = arith.addf %146, %147 : vector<8x128xf32>
    %149 = math.tanh %148 : vector<8x128xf32>
    %150 = arith.mulf %145, %149 : vector<8x128xf32>
    %c3_i32 = arith.constant 3 : i32
    %151 = arith.truncf %150 : vector<8x128xf32> to vector<8x128xbf16>
    %c0_56 = arith.constant 0 : index
    %c0_57 = arith.constant 0 : index
    %152 = vector.load %arg1[%c0_56, %c0_57] : memref<128x512xbf16, #tpu.memory_space<vmem>>, vector<128x512xbf16>
    %cst_58 = arith.constant dense<0.000000e+00> : vector<8x512xf32>
    %153 = tpu.matmul %151, %152, %cst_58 {dimension_numbers = #tpu.dot_dimension_numbers<[1], [0], [0], [1], [0, 0, 1, 1], [], []>} : vector<8x128xbf16>, vector<128x512xbf16>, vector<8x512xf32> -> vector<8x512xf32>
    %c1_i32_59 = arith.constant 1 : i32
    %154 = arith.addi %c3_i32, %c1_i32_59 : i32
    %155 = arith.index_cast %154 : i32 to index
    %c0_60 = arith.constant 0 : index
    %c0_61 = arith.constant 0 : index
    %156 = vector.load %arg0[%155, %c0_60, %c0_61] : memref<8x8x512xf32, #tpu.memory_space<vmem>>, vector<1x8x512xf32>
    %157 = vector.shape_cast %156 : vector<1x8x512xf32> to vector<8x512xf32>
    %158 = arith.addf %153, %157 : vector<8x512xf32>
    %159 = vector.extract_strided_slice %158 {offsets = [0, 0], sizes = [8, 128], strides = [1, 1]} : vector<8x512xf32> to vector<8x128xf32>
    %cst_62 = arith.constant 5.000000e-01 : f32
    %160 = vector.broadcast %cst_62 : f32 to vector<8x128xf32>
    %161 = arith.mulf %160, %159 : vector<8x128xf32>
    %162 = math.tanh %161 : vector<8x128xf32>
    %cst_63 = arith.constant 5.000000e-01 : f32
    %163 = vector.broadcast %cst_63 : f32 to vector<8x128xf32>
    %164 = arith.mulf %163, %162 : vector<8x128xf32>
    %cst_64 = arith.constant 5.000000e-01 : f32
    %165 = vector.broadcast %cst_64 : f32 to vector<8x128xf32>
    %166 = arith.addf %164, %165 : vector<8x128xf32>
    %167 = vector.extract_strided_slice %158 {offsets = [0, 128], sizes = [8, 128], strides = [1, 1]} : vector<8x512xf32> to vector<8x128xf32>
    %cst_65 = arith.constant 5.000000e-01 : f32
    %168 = vector.broadcast %cst_65 : f32 to vector<8x128xf32>
    %169 = arith.mulf %168, %167 : vector<8x128xf32>
    %170 = math.tanh %169 : vector<8x128xf32>
    %cst_66 = arith.constant 5.000000e-01 : f32
    %171 = vector.broadcast %cst_66 : f32 to vector<8x128xf32>
    %172 = arith.mulf %171, %170 : vector<8x128xf32>
    %cst_67 = arith.constant 5.000000e-01 : f32
    %173 = vector.broadcast %cst_67 : f32 to vector<8x128xf32>
    %174 = arith.addf %172, %173 : vector<8x128xf32>
    %175 = vector.extract_strided_slice %158 {offsets = [0, 256], sizes = [8, 128], strides = [1, 1]} : vector<8x512xf32> to vector<8x128xf32>
    %176 = math.tanh %175 : vector<8x128xf32>
    %177 = vector.extract_strided_slice %158 {offsets = [0, 384], sizes = [8, 128], strides = [1, 1]} : vector<8x512xf32> to vector<8x128xf32>
    %cst_68 = arith.constant 5.000000e-01 : f32
    %178 = vector.broadcast %cst_68 : f32 to vector<8x128xf32>
    %179 = arith.mulf %178, %177 : vector<8x128xf32>
    %180 = math.tanh %179 : vector<8x128xf32>
    %cst_69 = arith.constant 5.000000e-01 : f32
    %181 = vector.broadcast %cst_69 : f32 to vector<8x128xf32>
    %182 = arith.mulf %181, %180 : vector<8x128xf32>
    %cst_70 = arith.constant 5.000000e-01 : f32
    %183 = vector.broadcast %cst_70 : f32 to vector<8x128xf32>
    %184 = arith.addf %182, %183 : vector<8x128xf32>
    %185 = arith.mulf %174, %148 : vector<8x128xf32>
    %186 = arith.mulf %166, %176 : vector<8x128xf32>
    %187 = arith.addf %185, %186 : vector<8x128xf32>
    %188 = math.tanh %187 : vector<8x128xf32>
    %189 = arith.mulf %184, %188 : vector<8x128xf32>
    %c4_i32 = arith.constant 4 : i32
    %190 = arith.truncf %189 : vector<8x128xf32> to vector<8x128xbf16>
    %c0_71 = arith.constant 0 : index
    %c0_72 = arith.constant 0 : index
    %191 = vector.load %arg1[%c0_71, %c0_72] : memref<128x512xbf16, #tpu.memory_space<vmem>>, vector<128x512xbf16>
    %cst_73 = arith.constant dense<0.000000e+00> : vector<8x512xf32>
    %192 = tpu.matmul %190, %191, %cst_73 {dimension_numbers = #tpu.dot_dimension_numbers<[1], [0], [0], [1], [0, 0, 1, 1], [], []>} : vector<8x128xbf16>, vector<128x512xbf16>, vector<8x512xf32> -> vector<8x512xf32>
    %c1_i32_74 = arith.constant 1 : i32
    %193 = arith.addi %c4_i32, %c1_i32_74 : i32
    %194 = arith.index_cast %193 : i32 to index
    %c0_75 = arith.constant 0 : index
    %c0_76 = arith.constant 0 : index
    %195 = vector.load %arg0[%194, %c0_75, %c0_76] : memref<8x8x512xf32, #tpu.memory_space<vmem>>, vector<1x8x512xf32>
    %196 = vector.shape_cast %195 : vector<1x8x512xf32> to vector<8x512xf32>
    %197 = arith.addf %192, %196 : vector<8x512xf32>
    %198 = vector.extract_strided_slice %197 {offsets = [0, 0], sizes = [8, 128], strides = [1, 1]} : vector<8x512xf32> to vector<8x128xf32>
    %cst_77 = arith.constant 5.000000e-01 : f32
    %199 = vector.broadcast %cst_77 : f32 to vector<8x128xf32>
    %200 = arith.mulf %199, %198 : vector<8x128xf32>
    %201 = math.tanh %200 : vector<8x128xf32>
    %cst_78 = arith.constant 5.000000e-01 : f32
    %202 = vector.broadcast %cst_78 : f32 to vector<8x128xf32>
    %203 = arith.mulf %202, %201 : vector<8x128xf32>
    %cst_79 = arith.constant 5.000000e-01 : f32
    %204 = vector.broadcast %cst_79 : f32 to vector<8x128xf32>
    %205 = arith.addf %203, %204 : vector<8x128xf32>
    %206 = vector.extract_strided_slice %197 {offsets = [0, 128], sizes = [8, 128], strides = [1, 1]} : vector<8x512xf32> to vector<8x128xf32>
    %cst_80 = arith.constant 5.000000e-01 : f32
    %207 = vector.broadcast %cst_80 : f32 to vector<8x128xf32>
    %208 = arith.mulf %207, %206 : vector<8x128xf32>
    %209 = math.tanh %208 : vector<8x128xf32>
    %cst_81 = arith.constant 5.000000e-01 : f32
    %210 = vector.broadcast %cst_81 : f32 to vector<8x128xf32>
    %211 = arith.mulf %210, %209 : vector<8x128xf32>
    %cst_82 = arith.constant 5.000000e-01 : f32
    %212 = vector.broadcast %cst_82 : f32 to vector<8x128xf32>
    %213 = arith.addf %211, %212 : vector<8x128xf32>
    %214 = vector.extract_strided_slice %197 {offsets = [0, 256], sizes = [8, 128], strides = [1, 1]} : vector<8x512xf32> to vector<8x128xf32>
    %215 = math.tanh %214 : vector<8x128xf32>
    %216 = vector.extract_strided_slice %197 {offsets = [0, 384], sizes = [8, 128], strides = [1, 1]} : vector<8x512xf32> to vector<8x128xf32>
    %cst_83 = arith.constant 5.000000e-01 : f32
    %217 = vector.broadcast %cst_83 : f32 to vector<8x128xf32>
    %218 = arith.mulf %217, %216 : vector<8x128xf32>
    %219 = math.tanh %218 : vector<8x128xf32>
    %cst_84 = arith.constant 5.000000e-01 : f32
    %220 = vector.broadcast %cst_84 : f32 to vector<8x128xf32>
    %221 = arith.mulf %220, %219 : vector<8x128xf32>
    %cst_85 = arith.constant 5.000000e-01 : f32
    %222 = vector.broadcast %cst_85 : f32 to vector<8x128xf32>
    %223 = arith.addf %221, %222 : vector<8x128xf32>
    %224 = arith.mulf %213, %187 : vector<8x128xf32>
    %225 = arith.mulf %205, %215 : vector<8x128xf32>
    %226 = arith.addf %224, %225 : vector<8x128xf32>
    %227 = math.tanh %226 : vector<8x128xf32>
    %228 = arith.mulf %223, %227 : vector<8x128xf32>
    %c5_i32 = arith.constant 5 : i32
    %229 = arith.truncf %228 : vector<8x128xf32> to vector<8x128xbf16>
    %c0_86 = arith.constant 0 : index
    %c0_87 = arith.constant 0 : index
    %230 = vector.load %arg1[%c0_86, %c0_87] : memref<128x512xbf16, #tpu.memory_space<vmem>>, vector<128x512xbf16>
    %cst_88 = arith.constant dense<0.000000e+00> : vector<8x512xf32>
    %231 = tpu.matmul %229, %230, %cst_88 {dimension_numbers = #tpu.dot_dimension_numbers<[1], [0], [0], [1], [0, 0, 1, 1], [], []>} : vector<8x128xbf16>, vector<128x512xbf16>, vector<8x512xf32> -> vector<8x512xf32>
    %c1_i32_89 = arith.constant 1 : i32
    %232 = arith.addi %c5_i32, %c1_i32_89 : i32
    %233 = arith.index_cast %232 : i32 to index
    %c0_90 = arith.constant 0 : index
    %c0_91 = arith.constant 0 : index
    %234 = vector.load %arg0[%233, %c0_90, %c0_91] : memref<8x8x512xf32, #tpu.memory_space<vmem>>, vector<1x8x512xf32>
    %235 = vector.shape_cast %234 : vector<1x8x512xf32> to vector<8x512xf32>
    %236 = arith.addf %231, %235 : vector<8x512xf32>
    %237 = vector.extract_strided_slice %236 {offsets = [0, 0], sizes = [8, 128], strides = [1, 1]} : vector<8x512xf32> to vector<8x128xf32>
    %cst_92 = arith.constant 5.000000e-01 : f32
    %238 = vector.broadcast %cst_92 : f32 to vector<8x128xf32>
    %239 = arith.mulf %238, %237 : vector<8x128xf32>
    %240 = math.tanh %239 : vector<8x128xf32>
    %cst_93 = arith.constant 5.000000e-01 : f32
    %241 = vector.broadcast %cst_93 : f32 to vector<8x128xf32>
    %242 = arith.mulf %241, %240 : vector<8x128xf32>
    %cst_94 = arith.constant 5.000000e-01 : f32
    %243 = vector.broadcast %cst_94 : f32 to vector<8x128xf32>
    %244 = arith.addf %242, %243 : vector<8x128xf32>
    %245 = vector.extract_strided_slice %236 {offsets = [0, 128], sizes = [8, 128], strides = [1, 1]} : vector<8x512xf32> to vector<8x128xf32>
    %cst_95 = arith.constant 5.000000e-01 : f32
    %246 = vector.broadcast %cst_95 : f32 to vector<8x128xf32>
    %247 = arith.mulf %246, %245 : vector<8x128xf32>
    %248 = math.tanh %247 : vector<8x128xf32>
    %cst_96 = arith.constant 5.000000e-01 : f32
    %249 = vector.broadcast %cst_96 : f32 to vector<8x128xf32>
    %250 = arith.mulf %249, %248 : vector<8x128xf32>
    %cst_97 = arith.constant 5.000000e-01 : f32
    %251 = vector.broadcast %cst_97 : f32 to vector<8x128xf32>
    %252 = arith.addf %250, %251 : vector<8x128xf32>
    %253 = vector.extract_strided_slice %236 {offsets = [0, 256], sizes = [8, 128], strides = [1, 1]} : vector<8x512xf32> to vector<8x128xf32>
    %254 = math.tanh %253 : vector<8x128xf32>
    %255 = vector.extract_strided_slice %236 {offsets = [0, 384], sizes = [8, 128], strides = [1, 1]} : vector<8x512xf32> to vector<8x128xf32>
    %cst_98 = arith.constant 5.000000e-01 : f32
    %256 = vector.broadcast %cst_98 : f32 to vector<8x128xf32>
    %257 = arith.mulf %256, %255 : vector<8x128xf32>
    %258 = math.tanh %257 : vector<8x128xf32>
    %cst_99 = arith.constant 5.000000e-01 : f32
    %259 = vector.broadcast %cst_99 : f32 to vector<8x128xf32>
    %260 = arith.mulf %259, %258 : vector<8x128xf32>
    %cst_100 = arith.constant 5.000000e-01 : f32
    %261 = vector.broadcast %cst_100 : f32 to vector<8x128xf32>
    %262 = arith.addf %260, %261 : vector<8x128xf32>
    %263 = arith.mulf %252, %226 : vector<8x128xf32>
    %264 = arith.mulf %244, %254 : vector<8x128xf32>
    %265 = arith.addf %263, %264 : vector<8x128xf32>
    %266 = math.tanh %265 : vector<8x128xf32>
    %267 = arith.mulf %262, %266 : vector<8x128xf32>
    %c6_i32 = arith.constant 6 : i32
    %268 = arith.truncf %267 : vector<8x128xf32> to vector<8x128xbf16>
    %c0_101 = arith.constant 0 : index
    %c0_102 = arith.constant 0 : index
    %269 = vector.load %arg1[%c0_101, %c0_102] : memref<128x512xbf16, #tpu.memory_space<vmem>>, vector<128x512xbf16>
    %cst_103 = arith.constant dense<0.000000e+00> : vector<8x512xf32>
    %270 = tpu.matmul %268, %269, %cst_103 {dimension_numbers = #tpu.dot_dimension_numbers<[1], [0], [0], [1], [0, 0, 1, 1], [], []>} : vector<8x128xbf16>, vector<128x512xbf16>, vector<8x512xf32> -> vector<8x512xf32>
    %c1_i32_104 = arith.constant 1 : i32
    %271 = arith.addi %c6_i32, %c1_i32_104 : i32
    %272 = arith.index_cast %271 : i32 to index
    %c0_105 = arith.constant 0 : index
    %c0_106 = arith.constant 0 : index
    %273 = vector.load %arg0[%272, %c0_105, %c0_106] : memref<8x8x512xf32, #tpu.memory_space<vmem>>, vector<1x8x512xf32>
    %274 = vector.shape_cast %273 : vector<1x8x512xf32> to vector<8x512xf32>
    %275 = arith.addf %270, %274 : vector<8x512xf32>
    %276 = vector.extract_strided_slice %275 {offsets = [0, 0], sizes = [8, 128], strides = [1, 1]} : vector<8x512xf32> to vector<8x128xf32>
    %cst_107 = arith.constant 5.000000e-01 : f32
    %277 = vector.broadcast %cst_107 : f32 to vector<8x128xf32>
    %278 = arith.mulf %277, %276 : vector<8x128xf32>
    %279 = math.tanh %278 : vector<8x128xf32>
    %cst_108 = arith.constant 5.000000e-01 : f32
    %280 = vector.broadcast %cst_108 : f32 to vector<8x128xf32>
    %281 = arith.mulf %280, %279 : vector<8x128xf32>
    %cst_109 = arith.constant 5.000000e-01 : f32
    %282 = vector.broadcast %cst_109 : f32 to vector<8x128xf32>
    %283 = arith.addf %281, %282 : vector<8x128xf32>
    %284 = vector.extract_strided_slice %275 {offsets = [0, 128], sizes = [8, 128], strides = [1, 1]} : vector<8x512xf32> to vector<8x128xf32>
    %cst_110 = arith.constant 5.000000e-01 : f32
    %285 = vector.broadcast %cst_110 : f32 to vector<8x128xf32>
    %286 = arith.mulf %285, %284 : vector<8x128xf32>
    %287 = math.tanh %286 : vector<8x128xf32>
    %cst_111 = arith.constant 5.000000e-01 : f32
    %288 = vector.broadcast %cst_111 : f32 to vector<8x128xf32>
    %289 = arith.mulf %288, %287 : vector<8x128xf32>
    %cst_112 = arith.constant 5.000000e-01 : f32
    %290 = vector.broadcast %cst_112 : f32 to vector<8x128xf32>
    %291 = arith.addf %289, %290 : vector<8x128xf32>
    %292 = vector.extract_strided_slice %275 {offsets = [0, 256], sizes = [8, 128], strides = [1, 1]} : vector<8x512xf32> to vector<8x128xf32>
    %293 = math.tanh %292 : vector<8x128xf32>
    %294 = vector.extract_strided_slice %275 {offsets = [0, 384], sizes = [8, 128], strides = [1, 1]} : vector<8x512xf32> to vector<8x128xf32>
    %cst_113 = arith.constant 5.000000e-01 : f32
    %295 = vector.broadcast %cst_113 : f32 to vector<8x128xf32>
    %296 = arith.mulf %295, %294 : vector<8x128xf32>
    %297 = math.tanh %296 : vector<8x128xf32>
    %cst_114 = arith.constant 5.000000e-01 : f32
    %298 = vector.broadcast %cst_114 : f32 to vector<8x128xf32>
    %299 = arith.mulf %298, %297 : vector<8x128xf32>
    %cst_115 = arith.constant 5.000000e-01 : f32
    %300 = vector.broadcast %cst_115 : f32 to vector<8x128xf32>
    %301 = arith.addf %299, %300 : vector<8x128xf32>
    %302 = arith.mulf %291, %265 : vector<8x128xf32>
    %303 = arith.mulf %283, %293 : vector<8x128xf32>
    %304 = arith.addf %302, %303 : vector<8x128xf32>
    %305 = math.tanh %304 : vector<8x128xf32>
    %306 = arith.mulf %301, %305 : vector<8x128xf32>
    %c7_i32 = arith.constant 7 : i32
    %307 = arith.truncf %306 : vector<8x128xf32> to vector<8x128xbf16>
    %c0_116 = arith.constant 0 : index
    %c0_117 = arith.constant 0 : index
    %308 = vector.load %arg1[%c0_116, %c0_117] : memref<128x512xbf16, #tpu.memory_space<vmem>>, vector<128x512xbf16>
    %cst_118 = arith.constant dense<0.000000e+00> : vector<8x512xf32>
    %309 = tpu.matmul %307, %308, %cst_118 {dimension_numbers = #tpu.dot_dimension_numbers<[1], [0], [0], [1], [0, 0, 1, 1], [], []>} : vector<8x128xbf16>, vector<128x512xbf16>, vector<8x512xf32> -> vector<8x512xf32>
    %c0_119 = arith.constant 0 : index
    %c0_120 = arith.constant 0 : index
    %310 = vector.load %arg2[%c0_119, %c0_120] : memref<1x512xf32, #tpu.memory_space<vmem>>, vector<1x512xf32>
    %311 = vector.broadcast %310 : vector<1x512xf32> to vector<8x512xf32>
    %312 = arith.addf %309, %311 : vector<8x512xf32>
    %313 = vector.extract_strided_slice %312 {offsets = [0, 0], sizes = [8, 128], strides = [1, 1]} : vector<8x512xf32> to vector<8x128xf32>
    %cst_121 = arith.constant 5.000000e-01 : f32
    %314 = vector.broadcast %cst_121 : f32 to vector<8x128xf32>
    %315 = arith.mulf %314, %313 : vector<8x128xf32>
    %316 = math.tanh %315 : vector<8x128xf32>
    %cst_122 = arith.constant 5.000000e-01 : f32
    %317 = vector.broadcast %cst_122 : f32 to vector<8x128xf32>
    %318 = arith.mulf %317, %316 : vector<8x128xf32>
    %cst_123 = arith.constant 5.000000e-01 : f32
    %319 = vector.broadcast %cst_123 : f32 to vector<8x128xf32>
    %320 = arith.addf %318, %319 : vector<8x128xf32>
    %321 = vector.extract_strided_slice %312 {offsets = [0, 128], sizes = [8, 128], strides = [1, 1]} : vector<8x512xf32> to vector<8x128xf32>
    %cst_124 = arith.constant 5.000000e-01 : f32
    %322 = vector.broadcast %cst_124 : f32 to vector<8x128xf32>
    %323 = arith.mulf %322, %321 : vector<8x128xf32>
    %324 = math.tanh %323 : vector<8x128xf32>
    %cst_125 = arith.constant 5.000000e-01 : f32
    %325 = vector.broadcast %cst_125 : f32 to vector<8x128xf32>
    %326 = arith.mulf %325, %324 : vector<8x128xf32>
    %cst_126 = arith.constant 5.000000e-01 : f32
    %327 = vector.broadcast %cst_126 : f32 to vector<8x128xf32>
    %328 = arith.addf %326, %327 : vector<8x128xf32>
    %329 = vector.extract_strided_slice %312 {offsets = [0, 256], sizes = [8, 128], strides = [1, 1]} : vector<8x512xf32> to vector<8x128xf32>
    %330 = math.tanh %329 : vector<8x128xf32>
    %331 = vector.extract_strided_slice %312 {offsets = [0, 384], sizes = [8, 128], strides = [1, 1]} : vector<8x512xf32> to vector<8x128xf32>
    %cst_127 = arith.constant 5.000000e-01 : f32
    %332 = vector.broadcast %cst_127 : f32 to vector<8x128xf32>
    %333 = arith.mulf %332, %331 : vector<8x128xf32>
    %334 = math.tanh %333 : vector<8x128xf32>
    %cst_128 = arith.constant 5.000000e-01 : f32
    %335 = vector.broadcast %cst_128 : f32 to vector<8x128xf32>
    %336 = arith.mulf %335, %334 : vector<8x128xf32>
    %cst_129 = arith.constant 5.000000e-01 : f32
    %337 = vector.broadcast %cst_129 : f32 to vector<8x128xf32>
    %338 = arith.addf %336, %337 : vector<8x128xf32>
    %339 = arith.mulf %328, %304 : vector<8x128xf32>
    %340 = arith.mulf %320, %330 : vector<8x128xf32>
    %341 = arith.addf %339, %340 : vector<8x128xf32>
    %342 = math.tanh %341 : vector<8x128xf32>
    %343 = arith.mulf %338, %342 : vector<8x128xf32>
    %c0_130 = arith.constant 0 : index
    %c0_131 = arith.constant 0 : index
    %344 = vector.load %arg3[%c0_130, %c0_131] : memref<1x128xf32, #tpu.memory_space<vmem>>, vector<1x128xf32>
    %345 = vector.broadcast %344 : vector<1x128xf32> to vector<8x128xf32>
    %346 = arith.mulf %343, %345 : vector<8x128xf32>
    %cst_132 = arith.constant dense<0.000000e+00> : vector<8xf32>
    %347 = vector.multi_reduction <add>, %346, %cst_132 [1] : vector<8x128xf32> to vector<8xf32>
    %348 = vector.shape_cast %347 : vector<8xf32> to vector<8x1xf32>
    %c0_133 = arith.constant 0 : index
    %c0_134 = arith.constant 0 : index
    %349 = memref.load %arg4[%c0_133, %c0_134] : memref<1x1xf32, #tpu.memory_space<smem>>
    %350 = vector.broadcast %349 : f32 to vector<8x1xf32>
    %351 = arith.addf %348, %350 : vector<8x1xf32>
    %c0_135 = arith.constant 0 : index
    %c0_136 = arith.constant 0 : index
    %352 = vector.load %arg5[%c0_135, %c0_136] : memref<8x1xf32, #tpu.memory_space<vmem>>, vector<8x1xf32>
    tpu.vector_store %arg5[%c0_135, %c0_136], %351 {strides = array<i32>} : memref<8x1xf32, #tpu.memory_space<vmem>>, vector<8x1xf32>,
    return
  }
}

</mosaic_0001>

<llo_original>
// kernel: tpu_custom_call.1
$region0: #{tpu_custom_call.1}
  #allocation0 [shape = 'u32[]', space=smem, size = 0x4, offset = 0x4, fixed_abs, tag = 'smem constant byte address 0x4 - core index']
  #allocation1 [shape = 'u32[144,128]{1,0:T(1,128)}', space=vmem, size = 0x12000, scoped, tag = 'internal scratch']
  #allocation2 [shape = 'f32[1,1]{1,0:T(1,128)S(6)}', space=smem, size = 0x200, scoped, tag = 'scoped memory for tpu_custom_call.1']
  %s0 = inlined_call_operand.hbm [shape: f32[8,8,512], index: 0, kind: input, shape index: {}]
  %s1 = inlined_call_operand.hbm [shape: bf16[128,512], index: 1, kind: input, shape index: {}]
  %s2 = inlined_call_operand.vmem [shape: f32[1,512], index: 2, kind: input, shape index: {}]
  %s3 = inlined_call_operand.vmem [shape: f32[1,128], index: 3, kind: input, shape index: {}]
  %s4 = inlined_call_operand.<no memory space> [shape: f32[1,1], index: 4, kind: input, shape index: {}]
  %s5 = inlined_call_operand.vmem [shape: f32[8,1], index: 5, kind: output, shape index: {}]
  %s6 = sld [smem:[#allocation0]]
  $region38: #{tpu_custom_call.1} parent=0
    _
  %s8 = ssub.s32 1, %s6
  %s9 = scalar_select 0, %s8, %s6
  %10 = sst [smem:[#allocation2]] %s4
  $region1: #{tpu_custom_call.1} parent=0
    #allocation3 [shape = 'u8[131072]{0}', space=vmem, size = 0x20000, scoped, tag = 'input window, operand 0, single buffered']
    #allocation4 [shape = 's32[1]{0}', space=sflag, size = 0x4, scoped, tag = 'scoped memory for tpu_custom_call.1']
    #allocation5 [shape = 'u8[131072]{0}', space=vmem, size = 0x20000, scoped, tag = 'input window, operand 1, single buffered']
    #allocation6 [shape = 's32[1]{0}', space=sflag, size = 0x4, scoped, tag = 'scoped memory for tpu_custom_call.1']
    %11 = vsyncpa [#allocation4], 0
    %12 = vsyncpa [#allocation6], 0
    // Predicated region
    $region2: #{tpu_custom_call.1} parent=1 // pred_check
      _
    $region3: #{tpu_custom_call.1} parent=1 // pred_check_branch
      %14 = sbr.rel (0) target = $region5
    $region4: #{tpu_custom_call.1} parent=1 // pred_region
      %s16 = ssub.s32 4096, 4096
      %17 = vsyncadd [#allocation4], %s16
      %s18 = sshll.u32 [#allocation3], 4
      %s19 = int_to_ptr.vmem [resolvable:$true] %s18
      %24 = dma.hbm_to_vmem [thread:$0]  %s0, 4096, %s19, [#allocation4], 512, 512, 32
    $region5: #{tpu_custom_call.1} parent=1 // pred_fallthru
      _
    // Predicated region
    $region6: #{tpu_custom_call.1} parent=1 // pred_check
      _
    $region7: #{tpu_custom_call.1} parent=1 // pred_check_branch
      %26 = sbr.rel (0) target = $region9
    $region8: #{tpu_custom_call.1} parent=1 // pred_region
      %s28 = ssub.s32 4096, 4096
      %29 = vsyncadd [#allocation6], %s28
      %s30 = sshll.u32 [#allocation5], 4
      %s31 = int_to_ptr.vmem [resolvable:$true] %s30
      %36 = dma.hbm_to_vmem [thread:$0]  %s1, 4096, %s31, [#allocation6], 256, 256, 16
    $region9: #{tpu_custom_call.1} parent=1 // pred_fallthru
      _
    // Predicated region
    $region10: #{tpu_custom_call.1} parent=1 // pred_check
      _
    $region11: #{tpu_custom_call.1} parent=1 // pred_check_branch
      %38 = sbr.rel (0) target = $region13
    $region12: #{tpu_custom_call.1} parent=1 // pred_region
      _
    $region13: #{tpu_custom_call.1} parent=1 // pred_fallthru
      _
    // Predicated region
    $region14: #{tpu_custom_call.1} parent=1 // pred_check
      _
    $region15: #{tpu_custom_call.1} parent=1 // pred_check_branch
      %40 = sbr.rel (0) target = $region17
    $region16: #{tpu_custom_call.1} parent=1 // pred_region
      _
    $region17: #{tpu_custom_call.1} parent=1 // pred_fallthru
      _
    // Predicated region
    $region18: #{tpu_custom_call.1} parent=1 // pred_check
      _
    $region19: #{tpu_custom_call.1} parent=1 // pred_check_branch
      %42 = sbr.rel (0) target = $region21
    $region20: #{tpu_custom_call.1} parent=1 // pred_region
      _
    $region21: #{tpu_custom_call.1} parent=1 // pred_fallthru
      _
    // Predicated region
    $region22: #{tpu_custom_call.1} parent=1 // pred_check
      _
    $region23: #{tpu_custom_call.1} parent=1 // pred_check_branch
      %44 = sbr.rel (0) target = $region25
    $region24: #{tpu_custom_call.1} parent=1 // pred_region
      %45 = dma.done [#allocation4], 4096
    $region25: #{tpu_custom_call.1} parent=1 // pred_fallthru
      _
    // Predicated region
    $region26: #{tpu_custom_call.1} parent=1 // pred_check
      _
    $region27: #{tpu_custom_call.1} parent=1 // pred_check_branch
      %47 = sbr.rel (0) target = $region29
    $region28: #{tpu_custom_call.1} parent=1 // pred_region
      %48 = dma.done [#allocation6], 4096
    $region29: #{tpu_custom_call.1} parent=1 // pred_fallthru
      _
    %v50 = vld [vmem:[#allocation3] sm:$0xff]
    %v51 = vld [vmem:[#allocation3 + $0x8] sm:$0xff]
    %v52 = vld [vmem:[#allocation3 + $0x10] sm:$0xff]
    %v53 = vld [vmem:[#allocation3 + $0x18] sm:$0xff]
    %v54 = vmul.f32 %v50, 0.5
    %v55 = vtanh.pop %v54
    %v56 = vmul.f32 %v55, 0.5
    %v57 = vadd.f32 %v56, 0.5
    %v58 = vmul.f32 %v51, 0.5
    %v59 = vtanh.pop %v58
    %v60 = vmul.f32 %v59, 0.5
    %v61 = vadd.f32 %v60, 0.5
    %v62 = vtanh.pop %v52
    %v63 = vmul.f32 %v53, 0.5
    %v64 = vtanh.pop %v63
    %v65 = vmul.f32 %v64, 0.5
    %v66 = vadd.f32 %v65, 0.5
    %v67 = vmul.f32 %v61, 0.0
    %v68 = vmul.f32 %v57, %v62
    %v69 = vadd.f32 %v67, %v68
    %v70 = vtanh.pop %v69
    %v71 = vmul.f32 %v66, %v70
    %v72 = vpack.c.bf16 %v71, %v71
    %v73 = vld [vmem:[#allocation5] sm:$0xff]
    %v74 = vld [vmem:[#allocation5 + $0x8] sm:$0xff]
    %v75 = vld [vmem:[#allocation5 + $0x10] sm:$0xff]
    %v76 = vld [vmem:[#allocation5 + $0x18] sm:$0xff]
    %v77 = vld [vmem:[#allocation5 + $0x20] sm:$0xff]
    %v78 = vld [vmem:[#allocation5 + $0x28] sm:$0xff]
    %v79 = vld [vmem:[#allocation5 + $0x30] sm:$0xff]
    %v80 = vld [vmem:[#allocation5 + $0x38] sm:$0xff]
    %v81 = vld [vmem:[#allocation5 + $0x40] sm:$0xff]
    %v82 = vld [vmem:[#allocation5 + $0x48] sm:$0xff]
    %v83 = vld [vmem:[#allocation5 + $0x50] sm:$0xff]
    %v84 = vld [vmem:[#allocation5 + $0x58] sm:$0xff]
    %v85 = vld [vmem:[#allocation5 + $0x60] sm:$0xff]
    %v86 = vld [vmem:[#allocation5 + $0x68] sm:$0xff]
    %v87 = vld [vmem:[#allocation5 + $0x70] sm:$0xff]
    %v88 = vld [vmem:[#allocation5 + $0x78] sm:$0xff]
    %v89 = vld [vmem:[#allocation5 + $0x80] sm:$0xff]
    %v90 = vld [vmem:[#allocation5 + $0x88] sm:$0xff]
    %v91 = vld [vmem:[#allocation5 + $0x90] sm:$0xff]
    %v92 = vld [vmem:[#allocation5 + $0x98] sm:$0xff]
    %v93 = vld [vmem:[#allocation5 + $0xa0] sm:$0xff]
    %v94 = vld [vmem:[#allocation5 + $0xa8] sm:$0xff]
    %v95 = vld [vmem:[#allocation5 + $0xb0] sm:$0xff]
    %v96 = vld [vmem:[#allocation5 + $0xb8] sm:$0xff]
    %v97 = vld [vmem:[#allocation5 + $0xc0] sm:$0xff]
    %v98 = vld [vmem:[#allocation5 + $0xc8] sm:$0xff]
    %v99 = vld [vmem:[#allocation5 + $0xd0] sm:$0xff]
    %v100 = vld [vmem:[#allocation5 + $0xd8] sm:$0xff]
    %v101 = vld [vmem:[#allocation5 + $0xe0] sm:$0xff]
    %v102 = vld [vmem:[#allocation5 + $0xe8] sm:$0xff]
    %v103 = vld [vmem:[#allocation5 + $0xf0] sm:$0xff]
    %v104 = vld [vmem:[#allocation5 + $0xf8] sm:$0xff]
    %s105 = scalar_lea.vmem [#allocation3], 32
    %v106 = vld [vmem:[%s105] sm:$0xff]
    %v107 = vld [vmem:[%s105 + $0x8] sm:$0xff]
    %v108 = vld [vmem:[%s105 + $0x10] sm:$0xff]
    %v109 = vld [vmem:[%s105 + $0x18] sm:$0xff]
    %v142 = vunpack.c.l.b16 %v73
    %v143 = vunpack.c.h.b16 %v73
    %v144 = vunpack.c.l.b16 %v74
    %v145 = vunpack.c.h.b16 %v74
    %v146 = vunpack.c.l.b16 %v75
    %v147 = vunpack.c.h.b16 %v75
    %v148 = vunpack.c.l.b16 %v76
    %v149 = vunpack.c.h.b16 %v76
    %v150 = vunpack.c.l.b16 %v77
    %v151 = vunpack.c.h.b16 %v77
    %v152 = vunpack.c.l.b16 %v78
    %v153 = vunpack.c.h.b16 %v78
    %v154 = vunpack.c.l.b16 %v79
    %v155 = vunpack.c.h.b16 %v79
    %v156 = vunpack.c.l.b16 %v80
    %v157 = vunpack.c.h.b16 %v80
    %v158 = vunpack.c.l.b16 %v81
    %v159 = vunpack.c.h.b16 %v81
    %v160 = vunpack.c.l.b16 %v82
    %v161 = vunpack.c.h.b16 %v82
    %v162 = vunpack.c.l.b16 %v83
    %v163 = vunpack.c.h.b16 %v83
    %v164 = vunpack.c.l.b16 %v84
    %v165 = vunpack.c.h.b16 %v84
    %v166 = vunpack.c.l.b16 %v85
    %v167 = vunpack.c.h.b16 %v85
    %v168 = vunpack.c.l.b16 %v86
    %v169 = vunpack.c.h.b16 %v86
    %v170 = vunpack.c.l.b16 %v87
    %v171 = vunpack.c.h.b16 %v87
    %v172 = vunpack.c.l.b16 %v88
    %v173 = vunpack.c.h.b16 %v88
    %v174 = vunpack.c.l.b16 %v89
    %v175 = vunpack.c.h.b16 %v89
    %v176 = vunpack.c.l.b16 %v90
    %v177 = vunpack.c.h.b16 %v90
    %v178 = vunpack.c.l.b16 %v91
    %v179 = vunpack.c.h.b16 %v91
    %v180 = vunpack.c.l.b16 %v92
    %v181 = vunpack.c.h.b16 %v92
    %v182 = vunpack.c.l.b16 %v93
    %v183 = vunpack.c.h.b16 %v93
    %v184 = vunpack.c.l.b16 %v94
    %v185 = vunpack.c.h.b16 %v94
    %v186 = vunpack.c.l.b16 %v95
    %v187 = vunpack.c.h.b16 %v95
    %v188 = vunpack.c.l.b16 %v96
    %v189 = vunpack.c.h.b16 %v96
    %v190 = vunpack.c.l.b16 %v97
    %v191 = vunpack.c.h.b16 %v97
    %v192 = vunpack.c.l.b16 %v98
    %v193 = vunpack.c.h.b16 %v98
    %v194 = vunpack.c.l.b16 %v99
    %v195 = vunpack.c.h.b16 %v99
    %v196 = vunpack.c.l.b16 %v100
    %v197 = vunpack.c.h.b16 %v100
    %v198 = vunpack.c.l.b16 %v101
    %v199 = vunpack.c.h.b16 %v101
    %v200 = vunpack.c.l.b16 %v102
    %v201 = vunpack.c.h.b16 %v102
    %v202 = vunpack.c.l.b16 %v103
    %v203 = vunpack.c.h.b16 %v103
    %v204 = vunpack.c.l.b16 %v104
    %v205 = vunpack.c.h.b16 %v104
    %v206 = vpack.c.b16 %v146, %v142
    %v207 = vpack.c.b16 %v147, %v143
    %v208 = vpack.c.b16 %v148, %v144
    %v209 = vpack.c.b16 %v149, %v145
    %v210 = vpack.c.b16 %v154, %v150
    %v211 = vpack.c.b16 %v155, %v151
    %v212 = vpack.c.b16 %v156, %v152
    %v213 = vpack.c.b16 %v157, %v153
    %v214 = vpack.c.b16 %v162, %v158
    %v215 = vpack.c.b16 %v163, %v159
    %v216 = vpack.c.b16 %v164, %v160
    %v217 = vpack.c.b16 %v165, %v161
    %v218 = vpack.c.b16 %v170, %v166
    %v219 = vpack.c.b16 %v171, %v167
    %v220 = vpack.c.b16 %v172, %v168
    %v221 = vpack.c.b16 %v173, %v169
    %v222 = vpack.c.b16 %v178, %v174
    %v223 = vpack.c.b16 %v179, %v175
    %v224 = vpack.c.b16 %v180, %v176
    %v225 = vpack.c.b16 %v181, %v177
    %v226 = vpack.c.b16 %v186, %v182
    %v227 = vpack.c.b16 %v187, %v183
    %v228 = vpack.c.b16 %v188, %v184
    %v229 = vpack.c.b16 %v189, %v185
    %v230 = vpack.c.b16 %v194, %v190
    %v231 = vpack.c.b16 %v195, %v191
    %v232 = vpack.c.b16 %v196, %v192
    %v233 = vpack.c.b16 %v197, %v193
    %v234 = vpack.c.b16 %v202, %v198
    %v235 = vpack.c.b16 %v203, %v199
    %v236 = vpack.c.b16 %v204, %v200
    %v237 = vpack.c.b16 %v205, %v201
    %270 = vmatprep.subr.bf16.mxu0 %v207
    %271 = vmatpush1.bf16.msra.mxu0 %v206
    %272 = vmatprep.subr.bf16.mxu0 %v211
    %273 = vmatpush1.bf16.msra.mxu0 %v210
    %274 = vmatprep.subr.bf16.mxu0 %v215
    %275 = vmatpush1.bf16.msra.mxu0 %v214
    %276 = vmatprep.subr.bf16.mxu0 %v219
    %277 = vmatpush1.bf16.msra.mxu0 %v218
    %278 = vmatprep.subr.bf16.mxu0 %v223
    %279 = vmatpush1.bf16.msra.mxu0 %v222
    %280 = vmatprep.subr.bf16.mxu0 %v227
    %281 = vmatpush1.bf16.msra.mxu0 %v226
    %282 = vmatprep.subr.bf16.mxu0 %v231
    %283 = vmatpush1.bf16.msra.mxu0 %v230
    %284 = vmatprep.subr.bf16.mxu0 %v235
    %285 = vmatpush1.bf16.msra.mxu0 %v234
    %286 = vmatprep.subr.bf16.mxu0 0
    %287 = vmatpush1.bf16.msra.mxu0 0
    %288 = vmatprep.subr.bf16.mxu0 0
    %289 = vmatpush1.bf16.msra.mxu0 0
    %290 = vmatprep.subr.bf16.mxu0 0
    %291 = vmatpush1.bf16.msra.mxu0 0
    %292 = vmatprep.subr.bf16.mxu0 0
    %293 = vmatpush1.bf16.msra.mxu0 0
    %294 = vmatprep.subr.bf16.mxu0 0
    %295 = vmatpush1.bf16.msra.mxu0 0
    %296 = vmatprep.subr.bf16.mxu0 0
    %297 = vmatpush1.bf16.msra.mxu0 0
    %298 = vmatprep.subr.bf16.mxu0 0
    %299 = vmatpush1.bf16.msra.mxu0 0
    %300 = vmatprep.subr.bf16.mxu0 0
    %301 = vmatpush1.bf16.msra.mxu0 0
    %302 = vmatprep.mubr.bf16.mxu0 0
    %303 = vmatmul.mubr.bf16.gmra.mrb[0].mxu0 %v72
    %v304 = vpop.f32.mrb[0].mxu0
    %v305 = vadd.f32 %v106, %v304
    %v306 = vpop.f32.mrb[0].mxu0
    %v307 = vadd.f32 %v107, %v306
    %v308 = vpop.f32.mrb[0].mxu0
    %v309 = vpop.f32.mrb[0].mxu0
    %310 = vdwg.mxu0
    %311 = vmatprep.subr.bf16.mxu0 %v209
    %312 = vmatpush1.bf16.msra.mxu0 %v208
    %313 = vmatprep.subr.bf16.mxu0 %v213
    %314 = vmatpush1.bf16.msra.mxu0 %v212
    %315 = vmatprep.subr.bf16.mxu0 %v217
    %316 = vmatpush1.bf16.msra.mxu0 %v216
    %317 = vmatprep.subr.bf16.mxu0 %v221
    %318 = vmatpush1.bf16.msra.mxu0 %v220
    %319 = vmatprep.subr.bf16.mxu0 %v225
    %320 = vmatpush1.bf16.msra.mxu0 %v224
    %321 = vmatprep.subr.bf16.mxu0 %v229
    %322 = vmatpush1.bf16.msra.mxu0 %v228
    %323 = vmatprep.subr.bf16.mxu0 %v233
    %324 = vmatpush1.bf16.msra.mxu0 %v232
    %325 = vmatprep.subr.bf16.mxu0 %v237
    %326 = vmatpush1.bf16.msra.mxu0 %v236
    %327 = vmatprep.subr.bf16.mxu0 0
    %328 = vmatpush1.bf16.msra.mxu0 0
    %329 = vmatprep.subr.bf16.mxu0 0
    %330 = vmatpush1.bf16.msra.mxu0 0
    %331 = vmatprep.subr.bf16.mxu0 0
    %332 = vmatpush1.bf16.msra.mxu0 0
    %333 = vmatprep.subr.bf16.mxu0 0
    %334 = vmatpush1.bf16.msra.mxu0 0
    %335 = vmatprep.subr.bf16.mxu0 0
    %336 = vmatpush1.bf16.msra.mxu0 0
    %337 = vmatprep.subr.bf16.mxu0 0
    %338 = vmatpush1.bf16.msra.mxu0 0
    %339 = vmatprep.subr.bf16.mxu0 0
    %340 = vmatpush1.bf16.msra.mxu0 0
    %341 = vmatprep.subr.bf16.mxu0 0
    %342 = vmatpush1.bf16.msra.mxu0 0
    %343 = vmatprep.mubr.bf16.mxu0 0
    %344 = vmatmul.mubr.bf16.gmra.mrb[0].mxu0 %v72
    %v345 = vpop.f32.mrb[0].mxu0
    %v346 = vadd.f32 %v108, %v345
    %v347 = vpop.f32.mrb[0].mxu0
    %v348 = vadd.f32 %v109, %v347
    %v349 = vpop.f32.mrb[0].mxu0
    %v350 = vpop.f32.mrb[0].mxu0
    %351 = vdwg.mxu0
    %v352 = vmul.f32 %v305, 0.5
    %v353 = vtanh.pop %v352
    %v354 = vmul.f32 %v353, 0.5
    %v355 = vadd.f32 %v354, 0.5
    %v356 = vmul.f32 %v307, 0.5
    %v357 = vtanh.pop %v356
    %v358 = vmul.f32 %v357, 0.5
    %v359 = vadd.f32 %v358, 0.5
    %v360 = vtanh.pop %v346
    %v361 = vmul.f32 %v348, 0.5
    %v362 = vtanh.pop %v361
    %v363 = vmul.f32 %v362, 0.5
    %v364 = vadd.f32 %v363, 0.5
    %v365 = vmul.f32 %v359, %v69
    %v366 = vmul.f32 %v355, %v360
    %v367 = vadd.f32 %v365, %v366
    %v368 = vtanh.pop %v367
    %v369 = vmul.f32 %v364, %v368
    %v370 = vpack.c.bf16 %v369, %v369
    %s371 = scalar_lea.vmem [#allocation3], 64
    %v372 = vld [vmem:[%s371] sm:$0xff]
    %v373 = vld [vmem:[%s371 + $0x8] sm:$0xff]
    %v374 = vld [vmem:[%s371 + $0x10] sm:$0xff]
    %v375 = vld [vmem:[%s371 + $0x18] sm:$0xff]
    %376 = vmatprep.subr.bf16.mxu0 %v207
    %377 = vmatpush1.bf16.msra.mxu0 %v206
    %378 = vmatprep.subr.bf16.mxu0 %v211
    %379 = vmatpush1.bf16.msra.mxu0 %v210
    %380 = vmatprep.subr.bf16.mxu0 %v215
    %381 = vmatpush1.bf16.msra.mxu0 %v214
    %382 = vmatprep.subr.bf16.mxu0 %v219
    %383 = vmatpush1.bf16.msra.mxu0 %v218
    %384 = vmatprep.subr.bf16.mxu0 %v223
    %385 = vmatpush1.bf16.msra.mxu0 %v222
    %386 = vmatprep.subr.bf16.mxu0 %v227
    %387 = vmatpush1.bf16.msra.mxu0 %v226
    %388 = vmatprep.subr.bf16.mxu0 %v231
    %389 = vmatpush1.bf16.msra.mxu0 %v230
    %390 = vmatprep.subr.bf16.mxu0 %v235
    %391 = vmatpush1.bf16.msra.mxu0 %v234
    %392 = vmatprep.subr.bf16.mxu0 0
    %393 = vmatpush1.bf16.msra.mxu0 0
    %394 = vmatprep.subr.bf16.mxu0 0
    %395 = vmatpush1.bf16.msra.mxu0 0
    %396 = vmatprep.subr.bf16.mxu0 0
    %397 = vmatpush1.bf16.msra.mxu0 0
    %398 = vmatprep.subr.bf16.mxu0 0
    %399 = vmatpush1.bf16.msra.mxu0 0
    %400 = vmatprep.subr.bf16.mxu0 0
    %401 = vmatpush1.bf16.msra.mxu0 0
    %402 = vmatprep.subr.bf16.mxu0 0
    %403 = vmatpush1.bf16.msra.mxu0 0
    %404 = vmatprep.subr.bf16.mxu0 0
    %405 = vmatpush1.bf16.msra.mxu0 0
    %406 = vmatprep.subr.bf16.mxu0 0
    %407 = vmatpush1.bf16.msra.mxu0 0
    %408 = vmatprep.mubr.bf16.mxu0 0
    %409 = vmatmul.mubr.bf16.gmra.mrb[0].mxu0 %v370
    %v410 = vpop.f32.mrb[0].mxu0
    %v411 = vadd.f32 %v372, %v410
    %v412 = vpop.f32.mrb[0].mxu0
    %v413 = vadd.f32 %v373, %v412
    %v414 = vpop.f32.mrb[0].mxu0
    %v415 = vpop.f32.mrb[0].mxu0
    %416 = vdwg.mxu0
    %417 = vmatprep.subr.bf16.mxu0 %v209
    %418 = vmatpush1.bf16.msra.mxu0 %v208
    %419 = vmatprep.subr.bf16.mxu0 %v213
    %420 = vmatpush1.bf16.msra.mxu0 %v212
    %421 = vmatprep.subr.bf16.mxu0 %v217
    %422 = vmatpush1.bf16.msra.mxu0 %v216
    %423 = vmatprep.subr.bf16.mxu0 %v221
    %424 = vmatpush1.bf16.msra.mxu0 %v220
    %425 = vmatprep.subr.bf16.mxu0 %v225
    %426 = vmatpush1.bf16.msra.mxu0 %v224
    %427 = vmatprep.subr.bf16.mxu0 %v229
    %428 = vmatpush1.bf16.msra.mxu0 %v228
    %429 = vmatprep.subr.bf16.mxu0 %v233
    %430 = vmatpush1.bf16.msra.mxu0 %v232
    %431 = vmatprep.subr.bf16.mxu0 %v237
    %432 = vmatpush1.bf16.msra.mxu0 %v236
    %433 = vmatprep.subr.bf16.mxu0 0
    %434 = vmatpush1.bf16.msra.mxu0 0
    %435 = vmatprep.subr.bf16.mxu0 0
    %436 = vmatpush1.bf16.msra.mxu0 0
    %437 = vmatprep.subr.bf16.mxu0 0
    %438 = vmatpush1.bf16.msra.mxu0 0
    %439 = vmatprep.subr.bf16.mxu0 0
    %440 = vmatpush1.bf16.msra.mxu0 0
    %441 = vmatprep.subr.bf16.mxu0 0
    %442 = vmatpush1.bf16.msra.mxu0 0
    %443 = vmatprep.subr.bf16.mxu0 0
    %444 = vmatpush1.bf16.msra.mxu0 0
    %445 = vmatprep.subr.bf16.mxu0 0
    %446 = vmatpush1.bf16.msra.mxu0 0
    %447 = vmatprep.subr.bf16.mxu0 0
    %448 = vmatpush1.bf16.msra.mxu0 0
    %449 = vmatprep.mubr.bf16.mxu0 0
    %450 = vmatmul.mubr.bf16.gmra.mrb[0].mxu0 %v370
    %v451 = vpop.f32.mrb[0].mxu0
    %v452 = vadd.f32 %v374, %v451
    %v453 = vpop.f32.mrb[0].mxu0
    %v454 = vadd.f32 %v375, %v453
    %v455 = vpop.f32.mrb[0].mxu0
    %v456 = vpop.f32.mrb[0].mxu0
    %457 = vdwg.mxu0
    %v458 = vmul.f32 %v411, 0.5
    %v459 = vtanh.pop %v458
    %v460 = vmul.f32 %v459, 0.5
    %v461 = vadd.f32 %v460, 0.5
    %v462 = vmul.f32 %v413, 0.5
    %v463 = vtanh.pop %v462
    %v464 = vmul.f32 %v463, 0.5
    %v465 = vadd.f32 %v464, 0.5
    %v466 = vtanh.pop %v452
    %v467 = vmul.f32 %v454, 0.5
    %v468 = vtanh.pop %v467
    %v469 = vmul.f32 %v468, 0.5
    %v470 = vadd.f32 %v469, 0.5
    %v471 = vmul.f32 %v465, %v367
    %v472 = vmul.f32 %v461, %v466
    %v473 = vadd.f32 %v471, %v472
    %v474 = vtanh.pop %v473
    %v475 = vmul.f32 %v470, %v474
    %v476 = vpack.c.bf16 %v475, %v475
    %s477 = scalar_lea.vmem [#allocation3], 96
    %v478 = vld [vmem:[%s477] sm:$0xff]
    %v479 = vld [vmem:[%s477 + $0x8] sm:$0xff]
    %v480 = vld [vmem:[%s477 + $0x10] sm:$0xff]
    %v481 = vld [vmem:[%s477 + $0x18] sm:$0xff]
    %482 = vmatprep.subr.bf16.mxu0 %v207
    %483 = vmatpush1.bf16.msra.mxu0 %v206
    %484 = vmatprep.subr.bf16.mxu0 %v211
    %485 = vmatpush1.bf16.msra.mxu0 %v210
    %486 = vmatprep.subr.bf16.mxu0 %v215
    %487 = vmatpush1.bf16.msra.mxu0 %v214
    %488 = vmatprep.subr.bf16.mxu0 %v219
    %489 = vmatpush1.bf16.msra.mxu0 %v218
    %490 = vmatprep.subr.bf16.mxu0 %v223
    %491 = vmatpush1.bf16.msra.mxu0 %v222
    %492 = vmatprep.subr.bf16.mxu0 %v227
    %493 = vmatpush1.bf16.msra.mxu0 %v226
    %494 = vmatprep.subr.bf16.mxu0 %v231
    %495 = vmatpush1.bf16.msra.mxu0 %v230
    %496 = vmatprep.subr.bf16.mxu0 %v235
    %497 = vmatpush1.bf16.msra.mxu0 %v234
    %498 = vmatprep.subr.bf16.mxu0 0
    %499 = vmatpush1.bf16.msra.mxu0 0
    %500 = vmatprep.subr.bf16.mxu0 0
    %501 = vmatpush1.bf16.msra.mxu0 0
    %502 = vmatprep.subr.bf16.mxu0 0
    %503 = vmatpush1.bf16.msra.mxu0 0
    %504 = vmatprep.subr.bf16.mxu0 0
    %505 = vmatpush1.bf16.msra.mxu0 0
    %506 = vmatprep.subr.bf16.mxu0 0
    %507 = vmatpush1.bf16.msra.mxu0 0
    %508 = vmatprep.subr.bf16.mxu0 0
    %509 = vmatpush1.bf16.msra.mxu0 0
    %510 = vmatprep.subr.bf16.mxu0 0
    %511 = vmatpush1.bf16.msra.mxu0 0
    %512 = vmatprep.subr.bf16.mxu0 0
    %513 = vmatpush1.bf16.msra.mxu0 0
    %514 = vmatprep.mubr.bf16.mxu0 0
    %515 = vmatmul.mubr.bf16.gmra.mrb[0].mxu0 %v476
    %v516 = vpop.f32.mrb[0].mxu0
    %v517 = vadd.f32 %v478, %v516
    %v518 = vpop.f32.mrb[0].mxu0
    %v519 = vadd.f32 %v479, %v518
    %v520 = vpop.f32.mrb[0].mxu0
    %v521 = vpop.f32.mrb[0].mxu0
    %522 = vdwg.mxu0
    %523 = vmatprep.subr.bf16.mxu0 %v209
    %524 = vmatpush1.bf16.msra.mxu0 %v208
    %525 = vmatprep.subr.bf16.mxu0 %v213
    %526 = vmatpush1.bf16.msra.mxu0 %v212
    %527 = vmatprep.subr.bf16.mxu0 %v217
    %528 = vmatpush1.bf16.msra.mxu0 %v216
    %529 = vmatprep.subr.bf16.mxu0 %v221
    %530 = vmatpush1.bf16.msra.mxu0 %v220
    %531 = vmatprep.subr.bf16.mxu0 %v225
    %532 = vmatpush1.bf16.msra.mxu0 %v224
    %533 = vmatprep.subr.bf16.mxu0 %v229
    %534 = vmatpush1.bf16.msra.mxu0 %v228
    %535 = vmatprep.subr.bf16.mxu0 %v233
    %536 = vmatpush1.bf16.msra.mxu0 %v232
    %537 = vmatprep.subr.bf16.mxu0 %v237
    %538 = vmatpush1.bf16.msra.mxu0 %v236
    %539 = vmatprep.subr.bf16.mxu0 0
    %540 = vmatpush1.bf16.msra.mxu0 0
    %541 = vmatprep.subr.bf16.mxu0 0
    %542 = vmatpush1.bf16.msra.mxu0 0
    %543 = vmatprep.subr.bf16.mxu0 0
    %544 = vmatpush1.bf16.msra.mxu0 0
    %545 = vmatprep.subr.bf16.mxu0 0
    %546 = vmatpush1.bf16.msra.mxu0 0
    %547 = vmatprep.subr.bf16.mxu0 0
    %548 = vmatpush1.bf16.msra.mxu0 0
    %549 = vmatprep.subr.bf16.mxu0 0
    %550 = vmatpush1.bf16.msra.mxu0 0
    %551 = vmatprep.subr.bf16.mxu0 0
    %552 = vmatpush1.bf16.msra.mxu0 0
    %553 = vmatprep.subr.bf16.mxu0 0
    %554 = vmatpush1.bf16.msra.mxu0 0
    %555 = vmatprep.mubr.bf16.mxu0 0
    %556 = vmatmul.mubr.bf16.gmra.mrb[0].mxu0 %v476
    %v557 = vpop.f32.mrb[0].mxu0
    %v558 = vadd.f32 %v480, %v557
    %v559 = vpop.f32.mrb[0].mxu0
    %v560 = vadd.f32 %v481, %v559
    %v561 = vpop.f32.mrb[0].mxu0
    %v562 = vpop.f32.mrb[0].mxu0
    %563 = vdwg.mxu0
    %v564 = vmul.f32 %v517, 0.5
    %v565 = vtanh.pop %v564
    %v566 = vmul.f32 %v565, 0.5
    %v567 = vadd.f32 %v566, 0.5
    %v568 = vmul.f32 %v519, 0.5
    %v569 = vtanh.pop %v568
    %v570 = vmul.f32 %v569, 0.5
    %v571 = vadd.f32 %v570, 0.5
    %v572 = vtanh.pop %v558
    %v573 = vmul.f32 %v560, 0.5
    %v574 = vtanh.pop %v573
    %v575 = vmul.f32 %v574, 0.5
    %v576 = vadd.f32 %v575, 0.5
    %v577 = vmul.f32 %v571, %v473
    %v578 = vmul.f32 %v567, %v572
    %v579 = vadd.f32 %v577, %v578
    %v580 = vtanh.pop %v579
    %v581 = vmul.f32 %v576, %v580
    %v582 = vpack.c.bf16 %v581, %v581
    %s583 = scalar_lea.vmem [#allocation3], 128
    %v584 = vld [vmem:[%s583] sm:$0xff]
    %v585 = vld [vmem:[%s583 + $0x8] sm:$0xff]
    %v586 = vld [vmem:[%s583 + $0x10] sm:$0xff]
    %v587 = vld [vmem:[%s583 + $0x18] sm:$0xff]
    %588 = vmatprep.subr.bf16.mxu0 %v207
    %589 = vmatpush1.bf16.msra.mxu0 %v206
    %590 = vmatprep.subr.bf16.mxu0 %v211
    %591 = vmatpush1.bf16.msra.mxu0 %v210
    %592 = vmatprep.subr.bf16.mxu0 %v215
    %593 = vmatpush1.bf16.msra.mxu0 %v214
    %594 = vmatprep.subr.bf16.mxu0 %v219
    %595 = vmatpush1.bf16.msra.mxu0 %v218
    %596 = vmatprep.subr.bf16.mxu0 %v223
    %597 = vmatpush1.bf16.msra.mxu0 %v222
    %598 = vmatprep.subr.bf16.mxu0 %v227
    %599 = vmatpush1.bf16.msra.mxu0 %v226
    %600 = vmatprep.subr.bf16.mxu0 %v231
    %601 = vmatpush1.bf16.msra.mxu0 %v230
    %602 = vmatprep.subr.bf16.mxu0 %v235
    %603 = vmatpush1.bf16.msra.mxu0 %v234
    %604 = vmatprep.subr.bf16.mxu0 0
    %605 = vmatpush1.bf16.msra.mxu0 0
    %606 = vmatprep.subr.bf16.mxu0 0
    %607 = vmatpush1.bf16.msra.mxu0 0
    %608 = vmatprep.subr.bf16.mxu0 0
    %609 = vmatpush1.bf16.msra.mxu0 0
    %610 = vmatprep.subr.bf16.mxu0 0
    %611 = vmatpush1.bf16.msra.mxu0 0
    %612 = vmatprep.subr.bf16.mxu0 0
    %613 = vmatpush1.bf16.msra.mxu0 0
    %614 = vmatprep.subr.bf16.mxu0 0
    %615 = vmatpush1.bf16.msra.mxu0 0
    %616 = vmatprep.subr.bf16.mxu0 0
    %617 = vmatpush1.bf16.msra.mxu0 0
    %618 = vmatprep.subr.bf16.mxu0 0
    %619 = vmatpush1.bf16.msra.mxu0 0
    %620 = vmatprep.mubr.bf16.mxu0 0
    %621 = vmatmul.mubr.bf16.gmra.mrb[0].mxu0 %v582
    %v622 = vpop.f32.mrb[0].mxu0
    %v623 = vadd.f32 %v584, %v622
    %v624 = vpop.f32.mrb[0].mxu0
    %v625 = vadd.f32 %v585, %v624
    %v626 = vpop.f32.mrb[0].mxu0
    %v627 = vpop.f32.mrb[0].mxu0
    %628 = vdwg.mxu0
    %629 = vmatprep.subr.bf16.mxu0 %v209
    %630 = vmatpush1.bf16.msra.mxu0 %v208
    %631 = vmatprep.subr.bf16.mxu0 %v213
    %632 = vmatpush1.bf16.msra.mxu0 %v212
    %633 = vmatprep.subr.bf16.mxu0 %v217
    %634 = vmatpush1.bf16.msra.mxu0 %v216
    %635 = vmatprep.subr.bf16.mxu0 %v221
    %636 = vmatpush1.bf16.msra.mxu0 %v220
    %637 = vmatprep.subr.bf16.mxu0 %v225
    %638 = vmatpush1.bf16.msra.mxu0 %v224
    %639 = vmatprep.subr.bf16.mxu0 %v229
    %640 = vmatpush1.bf16.msra.mxu0 %v228
    %641 = vmatprep.subr.bf16.mxu0 %v233
    %642 = vmatpush1.bf16.msra.mxu0 %v232
    %643 = vmatprep.subr.bf16.mxu0 %v237
    %644 = vmatpush1.bf16.msra.mxu0 %v236
    %645 = vmatprep.subr.bf16.mxu0 0
    %646 = vmatpush1.bf16.msra.mxu0 0
    %647 = vmatprep.subr.bf16.mxu0 0
    %648 = vmatpush1.bf16.msra.mxu0 0
    %649 = vmatprep.subr.bf16.mxu0 0
    %650 = vmatpush1.bf16.msra.mxu0 0
    %651 = vmatprep.subr.bf16.mxu0 0
    %652 = vmatpush1.bf16.msra.mxu0 0
    %653 = vmatprep.subr.bf16.mxu0 0
    %654 = vmatpush1.bf16.msra.mxu0 0
    %655 = vmatprep.subr.bf16.mxu0 0
    %656 = vmatpush1.bf16.msra.mxu0 0
    %657 = vmatprep.subr.bf16.mxu0 0
    %658 = vmatpush1.bf16.msra.mxu0 0
    %659 = vmatprep.subr.bf16.mxu0 0
    %660 = vmatpush1.bf16.msra.mxu0 0
    %661 = vmatprep.mubr.bf16.mxu0 0
    %662 = vmatmul.mubr.bf16.gmra.mrb[0].mxu0 %v582
    %v663 = vpop.f32.mrb[0].mxu0
    %v664 = vadd.f32 %v586, %v663
    %v665 = vpop.f32.mrb[0].mxu0
    %v666 = vadd.f32 %v587, %v665
    %v667 = vpop.f32.mrb[0].mxu0
    %v668 = vpop.f32.mrb[0].mxu0
    %669 = vdwg.mxu0
    %v670 = vmul.f32 %v623, 0.5
    %v671 = vtanh.pop %v670
    %v672 = vmul.f32 %v671, 0.5
    %v673 = vadd.f32 %v672, 0.5
    %v674 = vmul.f32 %v625, 0.5
    %v675 = vtanh.pop %v674
    %v676 = vmul.f32 %v675, 0.5
    %v677 = vadd.f32 %v676, 0.5
    %v678 = vtanh.pop %v664
    %v679 = vmul.f32 %v666, 0.5
    %v680 = vtanh.pop %v679
    %v681 = vmul.f32 %v680, 0.5
    %v682 = vadd.f32 %v681, 0.5
    %v683 = vmul.f32 %v677, %v579
    %v684 = vmul.f32 %v673, %v678
    %v685 = vadd.f32 %v683, %v684
    %v686 = vtanh.pop %v685
    %v687 = vmul.f32 %v682, %v686
    %v688 = vpack.c.bf16 %v687, %v687
    %s689 = scalar_lea.vmem [#allocation3], 160
    %v690 = vld [vmem:[%s689] sm:$0xff]
    %v691 = vld [vmem:[%s689 + $0x8] sm:$0xff]
    %v692 = vld [vmem:[%s689 + $0x10] sm:$0xff]
    %v693 = vld [vmem:[%s689 + $0x18] sm:$0xff]
    %694 = vmatprep.subr.bf16.mxu0 %v207
    %695 = vmatpush1.bf16.msra.mxu0 %v206
    %696 = vmatprep.subr.bf16.mxu0 %v211
    %697 = vmatpush1.bf16.msra.mxu0 %v210
    %698 = vmatprep.subr.bf16.mxu0 %v215
    %699 = vmatpush1.bf16.msra.mxu0 %v214
    %700 = vmatprep.subr.bf16.mxu0 %v219
    %701 = vmatpush1.bf16.msra.mxu0 %v218
    %702 = vmatprep.subr.bf16.mxu0 %v223
    %703 = vmatpush1.bf16.msra.mxu0 %v222
    %704 = vmatprep.subr.bf16.mxu0 %v227
    %705 = vmatpush1.bf16.msra.mxu0 %v226
    %706 = vmatprep.subr.bf16.mxu0 %v231
    %707 = vmatpush1.bf16.msra.mxu0 %v230
    %708 = vmatprep.subr.bf16.mxu0 %v235
    %709 = vmatpush1.bf16.msra.mxu0 %v234
    %710 = vmatprep.subr.bf16.mxu0 0
    %711 = vmatpush1.bf16.msra.mxu0 0
    %712 = vmatprep.subr.bf16.mxu0 0
    %713 = vmatpush1.bf16.msra.mxu0 0
    %714 = vmatprep.subr.bf16.mxu0 0
    %715 = vmatpush1.bf16.msra.mxu0 0
    %716 = vmatprep.subr.bf16.mxu0 0
    %717 = vmatpush1.bf16.msra.mxu0 0
    %718 = vmatprep.subr.bf16.mxu0 0
    %719 = vmatpush1.bf16.msra.mxu0 0
    %720 = vmatprep.subr.bf16.mxu0 0
    %721 = vmatpush1.bf16.msra.mxu0 0
    %722 = vmatprep.subr.bf16.mxu0 0
    %723 = vmatpush1.bf16.msra.mxu0 0
    %724 = vmatprep.subr.bf16.mxu0 0
    %725 = vmatpush1.bf16.msra.mxu0 0
    %726 = vmatprep.mubr.bf16.mxu0 0
    %727 = vmatmul.mubr.bf16.gmra.mrb[0].mxu0 %v688
    %v728 = vpop.f32.mrb[0].mxu0
    %v729 = vadd.f32 %v690, %v728
    %v730 = vpop.f32.mrb[0].mxu0
    %v731 = vadd.f32 %v691, %v730
    %v732 = vpop.f32.mrb[0].mxu0
    %v733 = vpop.f32.mrb[0].mxu0
    %734 = vdwg.mxu0
    %735 = vmatprep.subr.bf16.mxu0 %v209
    %736 = vmatpush1.bf16.msra.mxu0 %v208
    %737 = vmatprep.subr.bf16.mxu0 %v213
    %738 = vmatpush1.bf16.msra.mxu0 %v212
    %739 = vmatprep.subr.bf16.mxu0 %v217
    %740 = vmatpush1.bf16.msra.mxu0 %v216
    %741 = vmatprep.subr.bf16.mxu0 %v221
    %742 = vmatpush1.bf16.msra.mxu0 %v220
    %743 = vmatprep.subr.bf16.mxu0 %v225
    %744 = vmatpush1.bf16.msra.mxu0 %v224
    %745 = vmatprep.subr.bf16.mxu0 %v229
    %746 = vmatpush1.bf16.msra.mxu0 %v228
    %747 = vmatprep.subr.bf16.mxu0 %v233
    %748 = vmatpush1.bf16.msra.mxu0 %v232
    %749 = vmatprep.subr.bf16.mxu0 %v237
    %750 = vmatpush1.bf16.msra.mxu0 %v236
    %751 = vmatprep.subr.bf16.mxu0 0
    %752 = vmatpush1.bf16.msra.mxu0 0
    %753 = vmatprep.subr.bf16.mxu0 0
    %754 = vmatpush1.bf16.msra.mxu0 0
    %755 = vmatprep.subr.bf16.mxu0 0
    %756 = vmatpush1.bf16.msra.mxu0 0
    %757 = vmatprep.subr.bf16.mxu0 0
    %758 = vmatpush1.bf16.msra.mxu0 0
    %759 = vmatprep.subr.bf16.mxu0 0
    %760 = vmatpush1.bf16.msra.mxu0 0
    %761 = vmatprep.subr.bf16.mxu0 0
    %762 = vmatpush1.bf16.msra.mxu0 0
    %763 = vmatprep.subr.bf16.mxu0 0
    %764 = vmatpush1.bf16.msra.mxu0 0
    %765 = vmatprep.subr.bf16.mxu0 0
    %766 = vmatpush1.bf16.msra.mxu0 0
    %767 = vmatprep.mubr.bf16.mxu0 0
    %768 = vmatmul.mubr.bf16.gmra.mrb[0].mxu0 %v688
    %v769 = vpop.f32.mrb[0].mxu0
    %v770 = vadd.f32 %v692, %v769
    %v771 = vpop.f32.mrb[0].mxu0
    %v772 = vadd.f32 %v693, %v771
    %v773 = vpop.f32.mrb[0].mxu0
    %v774 = vpop.f32.mrb[0].mxu0
    %775 = vdwg.mxu0
    %v776 = vmul.f32 %v729, 0.5
    %v777 = vtanh.pop %v776
    %v778 = vmul.f32 %v777, 0.5
    %v779 = vadd.f32 %v778, 0.5
    %v780 = vmul.f32 %v731, 0.5
    %v781 = vtanh.pop %v780
    %v782 = vmul.f32 %v781, 0.5
    %v783 = vadd.f32 %v782, 0.5
    %v784 = vtanh.pop %v770
    %v785 = vmul.f32 %v772, 0.5
    %v786 = vtanh.pop %v785
    %v787 = vmul.f32 %v786, 0.5
    %v788 = vadd.f32 %v787, 0.5
    %v789 = vmul.f32 %v783, %v685
    %v790 = vmul.f32 %v779, %v784
    %v791 = vadd.f32 %v789, %v790
    %v792 = vtanh.pop %v791
    %v793 = vmul.f32 %v788, %v792
    %v794 = vpack.c.bf16 %v793, %v793
    %s795 = scalar_lea.vmem [#allocation3], 192
    %v796 = vld [vmem:[%s795] sm:$0xff]
    %v797 = vld [vmem:[%s795 + $0x8] sm:$0xff]
    %v798 = vld [vmem:[%s795 + $0x10] sm:$0xff]
    %v799 = vld [vmem:[%s795 + $0x18] sm:$0xff]
    %800 = vmatprep.subr.bf16.mxu0 %v207
    %801 = vmatpush1.bf16.msra.mxu0 %v206
    %802 = vmatprep.subr.bf16.mxu0 %v211
    %803 = vmatpush1.bf16.msra.mxu0 %v210
    %804 = vmatprep.subr.bf16.mxu0 %v215
    %805 = vmatpush1.bf16.msra.mxu0 %v214
    %806 = vmatprep.subr.bf16.mxu0 %v219
    %807 = vmatpush1.bf16.msra.mxu0 %v218
    %808 = vmatprep.subr.bf16.mxu0 %v223
    %809 = vmatpush1.bf16.msra.mxu0 %v222
    %810 = vmatprep.subr.bf16.mxu0 %v227
    %811 = vmatpush1.bf16.msra.mxu0 %v226
    %812 = vmatprep.subr.bf16.mxu0 %v231
    %813 = vmatpush1.bf16.msra.mxu0 %v230
    %814 = vmatprep.subr.bf16.mxu0 %v235
    %815 = vmatpush1.bf16.msra.mxu0 %v234
    %816 = vmatprep.subr.bf16.mxu0 0
    %817 = vmatpush1.bf16.msra.mxu0 0
    %818 = vmatprep.subr.bf16.mxu0 0
    %819 = vmatpush1.bf16.msra.mxu0 0
    %820 = vmatprep.subr.bf16.mxu0 0
    %821 = vmatpush1.bf16.msra.mxu0 0
    %822 = vmatprep.subr.bf16.mxu0 0
    %823 = vmatpush1.bf16.msra.mxu0 0
    %824 = vmatprep.subr.bf16.mxu0 0
    %825 = vmatpush1.bf16.msra.mxu0 0
    %826 = vmatprep.subr.bf16.mxu0 0
    %827 = vmatpush1.bf16.msra.mxu0 0
    %828 = vmatprep.subr.bf16.mxu0 0
    %829 = vmatpush1.bf16.msra.mxu0 0
    %830 = vmatprep.subr.bf16.mxu0 0
    %831 = vmatpush1.bf16.msra.mxu0 0
    %832 = vmatprep.mubr.bf16.mxu0 0
    %833 = vmatmul.mubr.bf16.gmra.mrb[0].mxu0 %v794
    %v834 = vpop.f32.mrb[0].mxu0
    %v835 = vadd.f32 %v796, %v834
    %v836 = vpop.f32.mrb[0].mxu0
    %v837 = vadd.f32 %v797, %v836
    %v838 = vpop.f32.mrb[0].mxu0
    %v839 = vpop.f32.mrb[0].mxu0
    %840 = vdwg.mxu0
    %841 = vmatprep.subr.bf16.mxu0 %v209
    %842 = vmatpush1.bf16.msra.mxu0 %v208
    %843 = vmatprep.subr.bf16.mxu0 %v213
    %844 = vmatpush1.bf16.msra.mxu0 %v212
    %845 = vmatprep.subr.bf16.mxu0 %v217
    %846 = vmatpush1.bf16.msra.mxu0 %v216
    %847 = vmatprep.subr.bf16.mxu0 %v221
    %848 = vmatpush1.bf16.msra.mxu0 %v220
    %849 = vmatprep.subr.bf16.mxu0 %v225
    %850 = vmatpush1.bf16.msra.mxu0 %v224
    %851 = vmatprep.subr.bf16.mxu0 %v229
    %852 = vmatpush1.bf16.msra.mxu0 %v228
    %853 = vmatprep.subr.bf16.mxu0 %v233
    %854 = vmatpush1.bf16.msra.mxu0 %v232
    %855 = vmatprep.subr.bf16.mxu0 %v237
    %856 = vmatpush1.bf16.msra.mxu0 %v236
    %857 = vmatprep.subr.bf16.mxu0 0
    %858 = vmatpush1.bf16.msra.mxu0 0
    %859 = vmatprep.subr.bf16.mxu0 0
    %860 = vmatpush1.bf16.msra.mxu0 0
    %861 = vmatprep.subr.bf16.mxu0 0
    %862 = vmatpush1.bf16.msra.mxu0 0
    %863 = vmatprep.subr.bf16.mxu0 0
    %864 = vmatpush1.bf16.msra.mxu0 0
    %865 = vmatprep.subr.bf16.mxu0 0
    %866 = vmatpush1.bf16.msra.mxu0 0
    %867 = vmatprep.subr.bf16.mxu0 0
    %868 = vmatpush1.bf16.msra.mxu0 0
    %869 = vmatprep.subr.bf16.mxu0 0
    %870 = vmatpush1.bf16.msra.mxu0 0
    %871 = vmatprep.subr.bf16.mxu0 0
    %872 = vmatpush1.bf16.msra.mxu0 0
    %873 = vmatprep.mubr.bf16.mxu0 0
    %874 = vmatmul.mubr.bf16.gmra.mrb[0].mxu0 %v794
    %v875 = vpop.f32.mrb[0].mxu0
    %v876 = vadd.f32 %v798, %v875
    %v877 = vpop.f32.mrb[0].mxu0
    %v878 = vadd.f32 %v799, %v877
    %v879 = vpop.f32.mrb[0].mxu0
    %v880 = vpop.f32.mrb[0].mxu0
    %881 = vdwg.mxu0
    %v882 = vmul.f32 %v835, 0.5
    %v883 = vtanh.pop %v882
    %v884 = vmul.f32 %v883, 0.5
    %v885 = vadd.f32 %v884, 0.5
    %v886 = vmul.f32 %v837, 0.5
    %v887 = vtanh.pop %v886
    %v888 = vmul.f32 %v887, 0.5
    %v889 = vadd.f32 %v888, 0.5
    %v890 = vtanh.pop %v876
    %v891 = vmul.f32 %v878, 0.5
    %v892 = vtanh.pop %v891
    %v893 = vmul.f32 %v892, 0.5
    %v894 = vadd.f32 %v893, 0.5
    %v895 = vmul.f32 %v889, %v791
    %v896 = vmul.f32 %v885, %v890
    %v897 = vadd.f32 %v895, %v896
    %v898 = vtanh.pop %v897
    %v899 = vmul.f32 %v894, %v898
    %v900 = vpack.c.bf16 %v899, %v899
    %s901 = scalar_lea.vmem [#allocation3], 224
    %v902 = vld [vmem:[%s901] sm:$0xff]
    %v903 = vld [vmem:[%s901 + $0x8] sm:$0xff]
    %v904 = vld [vmem:[%s901 + $0x10] sm:$0xff]
    %v905 = vld [vmem:[%s901 + $0x18] sm:$0xff]
    %906 = vmatprep.subr.bf16.mxu0 %v207
    %907 = vmatpush1.bf16.msra.mxu0 %v206
    %908 = vmatprep.subr.bf16.mxu0 %v211
    %909 = vmatpush1.bf16.msra.mxu0 %v210
    %910 = vmatprep.subr.bf16.mxu0 %v215
    %911 = vmatpush1.bf16.msra.mxu0 %v214
    %912 = vmatprep.subr.bf16.mxu0 %v219
    %913 = vmatpush1.bf16.msra.mxu0 %v218
    %914 = vmatprep.subr.bf16.mxu0 %v223
    %915 = vmatpush1.bf16.msra.mxu0 %v222
    %916 = vmatprep.subr.bf16.mxu0 %v227
    %917 = vmatpush1.bf16.msra.mxu0 %v226
    %918 = vmatprep.subr.bf16.mxu0 %v231
    %919 = vmatpush1.bf16.msra.mxu0 %v230
    %920 = vmatprep.subr.bf16.mxu0 %v235
    %921 = vmatpush1.bf16.msra.mxu0 %v234
    %922 = vmatprep.subr.bf16.mxu0 0
    %923 = vmatpush1.bf16.msra.mxu0 0
    %924 = vmatprep.subr.bf16.mxu0 0
    %925 = vmatpush1.bf16.msra.mxu0 0
    %926 = vmatprep.subr.bf16.mxu0 0
    %927 = vmatpush1.bf16.msra.mxu0 0
    %928 = vmatprep.subr.bf16.mxu0 0
    %929 = vmatpush1.bf16.msra.mxu0 0
    %930 = vmatprep.subr.bf16.mxu0 0
    %931 = vmatpush1.bf16.msra.mxu0 0
    %932 = vmatprep.subr.bf16.mxu0 0
    %933 = vmatpush1.bf16.msra.mxu0 0
    %934 = vmatprep.subr.bf16.mxu0 0
    %935 = vmatpush1.bf16.msra.mxu0 0
    %936 = vmatprep.subr.bf16.mxu0 0
    %937 = vmatpush1.bf16.msra.mxu0 0
    %938 = vmatprep.mubr.bf16.mxu0 0
    %939 = vmatmul.mubr.bf16.gmra.mrb[0].mxu0 %v900
    %v940 = vpop.f32.mrb[0].mxu0
    %v941 = vadd.f32 %v902, %v940
    %v942 = vpop.f32.mrb[0].mxu0
    %v943 = vadd.f32 %v903, %v942
    %v944 = vpop.f32.mrb[0].mxu0
    %v945 = vpop.f32.mrb[0].mxu0
    %946 = vdwg.mxu0
    %947 = vmatprep.subr.bf16.mxu0 %v209
    %948 = vmatpush1.bf16.msra.mxu0 %v208
    %949 = vmatprep.subr.bf16.mxu0 %v213
    %950 = vmatpush1.bf16.msra.mxu0 %v212
    %951 = vmatprep.subr.bf16.mxu0 %v217
    %952 = vmatpush1.bf16.msra.mxu0 %v216
    %953 = vmatprep.subr.bf16.mxu0 %v221
    %954 = vmatpush1.bf16.msra.mxu0 %v220
    %955 = vmatprep.subr.bf16.mxu0 %v225
    %956 = vmatpush1.bf16.msra.mxu0 %v224
    %957 = vmatprep.subr.bf16.mxu0 %v229
    %958 = vmatpush1.bf16.msra.mxu0 %v228
    %959 = vmatprep.subr.bf16.mxu0 %v233
    %960 = vmatpush1.bf16.msra.mxu0 %v232
    %961 = vmatprep.subr.bf16.mxu0 %v237
    %962 = vmatpush1.bf16.msra.mxu0 %v236
    %963 = vmatprep.subr.bf16.mxu0 0
    %964 = vmatpush1.bf16.msra.mxu0 0
    %965 = vmatprep.subr.bf16.mxu0 0
    %966 = vmatpush1.bf16.msra.mxu0 0
    %967 = vmatprep.subr.bf16.mxu0 0
    %968 = vmatpush1.bf16.msra.mxu0 0
    %969 = vmatprep.subr.bf16.mxu0 0
    %970 = vmatpush1.bf16.msra.mxu0 0
    %971 = vmatprep.subr.bf16.mxu0 0
    %972 = vmatpush1.bf16.msra.mxu0 0
    %973 = vmatprep.subr.bf16.mxu0 0
    %974 = vmatpush1.bf16.msra.mxu0 0
    %975 = vmatprep.subr.bf16.mxu0 0
    %976 = vmatpush1.bf16.msra.mxu0 0
    %977 = vmatprep.subr.bf16.mxu0 0
    %978 = vmatpush1.bf16.msra.mxu0 0
    %979 = vmatprep.mubr.bf16.mxu0 0
    %980 = vmatmul.mubr.bf16.gmra.mrb[0].mxu0 %v900
    %v981 = vpop.f32.mrb[0].mxu0
    %v982 = vadd.f32 %v904, %v981
    %v983 = vpop.f32.mrb[0].mxu0
    %v984 = vadd.f32 %v905, %v983
    %v985 = vpop.f32.mrb[0].mxu0
    %v986 = vpop.f32.mrb[0].mxu0
    %987 = vdwg.mxu0
    %v988 = vmul.f32 %v941, 0.5
    %v989 = vtanh.pop %v988
    %v990 = vmul.f32 %v989, 0.5
    %v991 = vadd.f32 %v990, 0.5
    %v992 = vmul.f32 %v943, 0.5
    %v993 = vtanh.pop %v992
    %v994 = vmul.f32 %v993, 0.5
    %v995 = vadd.f32 %v994, 0.5
    %v996 = vtanh.pop %v982
    %v997 = vmul.f32 %v984, 0.5
    %v998 = vtanh.pop %v997
    %v999 = vmul.f32 %v998, 0.5
    %v1000 = vadd.f32 %v999, 0.5
    %v1001 = vmul.f32 %v995, %v897
    %v1002 = vmul.f32 %v991, %v996
    %v1003 = vadd.f32 %v1001, %v1002
    %v1004 = vtanh.pop %v1003
    %v1005 = vmul.f32 %v1000, %v1004
    %v1006 = vpack.c.bf16 %v1005, %v1005
    %v1007 = vld [vmem:[%s2] sm:$0xf]
    %v1009 = vlaneseq
    %v1010 = vshrl.u32 %v1009, 7
    %v1011 = vsub.s32 0, %v1010
    %v1012 = vrot.slane %v1007, %v1011
    %v1013 = vlaneseq
    %v1014 = vshrl.u32 %v1013, 7
    %v1015 = vsub.s32 1, %v1014
    %v1016 = vrot.slane %v1007, %v1015
    %v1017 = vlaneseq
    %v1018 = vshrl.u32 %v1017, 7
    %v1019 = vsub.s32 2, %v1018
    %v1020 = vrot.slane %v1007, %v1019
    %v1021 = vlaneseq
    %v1022 = vshrl.u32 %v1021, 7
    %v1023 = vsub.s32 3, %v1022
    %v1024 = vrot.slane %v1007, %v1023
    %1029 = vmatprep.subr.bf16.mxu0 %v207
    %1030 = vmatpush1.bf16.msra.mxu0 %v206
    %1031 = vmatprep.subr.bf16.mxu0 %v211
    %1032 = vmatpush1.bf16.msra.mxu0 %v210
    %1033 = vmatprep.subr.bf16.mxu0 %v215
    %1034 = vmatpush1.bf16.msra.mxu0 %v214
    %1035 = vmatprep.subr.bf16.mxu0 %v219
    %1036 = vmatpush1.bf16.msra.mxu0 %v218
    %1037 = vmatprep.subr.bf16.mxu0 %v223
    %1038 = vmatpush1.bf16.msra.mxu0 %v222
    %1039 = vmatprep.subr.bf16.mxu0 %v227
    %1040 = vmatpush1.bf16.msra.mxu0 %v226
    %1041 = vmatprep.subr.bf16.mxu0 %v231
    %1042 = vmatpush1.bf16.msra.mxu0 %v230
    %1043 = vmatprep.subr.bf16.mxu0 %v235
    %1044 = vmatpush1.bf16.msra.mxu0 %v234
    %1045 = vmatprep.subr.bf16.mxu0 0
    %1046 = vmatpush1.bf16.msra.mxu0 0
    %1047 = vmatprep.subr.bf16.mxu0 0
    %1048 = vmatpush1.bf16.msra.mxu0 0
    %1049 = vmatprep.subr.bf16.mxu0 0
    %1050 = vmatpush1.bf16.msra.mxu0 0
    %1051 = vmatprep.subr.bf16.mxu0 0
    %1052 = vmatpush1.bf16.msra.mxu0 0
    %1053 = vmatprep.subr.bf16.mxu0 0
    %1054 = vmatpush1.bf16.msra.mxu0 0
    %1055 = vmatprep.subr.bf16.mxu0 0
    %1056 = vmatpush1.bf16.msra.mxu0 0
    %1057 = vmatprep.subr.bf16.mxu0 0
    %1058 = vmatpush1.bf16.msra.mxu0 0
    %1059 = vmatprep.subr.bf16.mxu0 0
    %1060 = vmatpush1.bf16.msra.mxu0 0
    %1061 = vmatprep.mubr.bf16.mxu0 0
    %1062 = vmatmul.mubr.bf16.gmra.mrb[0].mxu0 %v1006
    %v1063 = vpop.f32.mrb[0].mxu0
    %v1064 = vadd.f32 %v1012, %v1063
    %v1065 = vpop.f32.mrb[0].mxu0
    %v1066 = vadd.f32 %v1016, %v1065
    %v1067 = vpop.f32.mrb[0].mxu0
    %v1068 = vpop.f32.mrb[0].mxu0
    %1069 = vdwg.mxu0
    %1070 = vmatprep.subr.bf16.mxu0 %v209
    %1071 = vmatpush1.bf16.msra.mxu0 %v208
    %1072 = vmatprep.subr.bf16.mxu0 %v213
    %1073 = vmatpush1.bf16.msra.mxu0 %v212
    %1074 = vmatprep.subr.bf16.mxu0 %v217
    %1075 = vmatpush1.bf16.msra.mxu0 %v216
    %1076 = vmatprep.subr.bf16.mxu0 %v221
    %1077 = vmatpush1.bf16.msra.mxu0 %v220
    %1078 = vmatprep.subr.bf16.mxu0 %v225
    %1079 = vmatpush1.bf16.msra.mxu0 %v224
    %1080 = vmatprep.subr.bf16.mxu0 %v229
    %1081 = vmatpush1.bf16.msra.mxu0 %v228
    %1082 = vmatprep.subr.bf16.mxu0 %v233
    %1083 = vmatpush1.bf16.msra.mxu0 %v232
    %1084 = vmatprep.subr.bf16.mxu0 %v237
    %1085 = vmatpush1.bf16.msra.mxu0 %v236
    %1086 = vmatprep.subr.bf16.mxu0 0
    %1087 = vmatpush1.bf16.msra.mxu0 0
    %1088 = vmatprep.subr.bf16.mxu0 0
    %1089 = vmatpush1.bf16.msra.mxu0 0
    %1090 = vmatprep.subr.bf16.mxu0 0
    %1091 = vmatpush1.bf16.msra.mxu0 0
    %1092 = vmatprep.subr.bf16.mxu0 0
    %1093 = vmatpush1.bf16.msra.mxu0 0
    %1094 = vmatprep.subr.bf16.mxu0 0
    %1095 = vmatpush1.bf16.msra.mxu0 0
    %1096 = vmatprep.subr.bf16.mxu0 0
    %1097 = vmatpush1.bf16.msra.mxu0 0
    %1098 = vmatprep.subr.bf16.mxu0 0
    %1099 = vmatpush1.bf16.msra.mxu0 0
    %1100 = vmatprep.subr.bf16.mxu0 0
    %1101 = vmatpush1.bf16.msra.mxu0 0
    %1102 = vmatprep.mubr.bf16.mxu0 0
    %1103 = vmatmul.mubr.bf16.gmra.mrb[0].mxu0 %v1006
    %v1104 = vpop.f32.mrb[0].mxu0
    %v1105 = vadd.f32 %v1020, %v1104
    %v1106 = vpop.f32.mrb[0].mxu0
    %v1107 = vadd.f32 %v1024, %v1106
    %v1108 = vpop.f32.mrb[0].mxu0
    %v1109 = vpop.f32.mrb[0].mxu0
    %1110 = vdwg.mxu0
    %v1111 = vmul.f32 %v1064, 0.5
    %v1112 = vtanh.pop %v1111
    %v1113 = vmul.f32 %v1112, 0.5
    %v1114 = vadd.f32 %v1113, 0.5
    %v1115 = vmul.f32 %v1066, 0.5
    %v1116 = vtanh.pop %v1115
    %v1117 = vmul.f32 %v1116, 0.5
    %v1118 = vadd.f32 %v1117, 0.5
    %v1119 = vtanh.pop %v1105
    %v1120 = vmul.f32 %v1107, 0.5
    %v1121 = vtanh.pop %v1120
    %v1122 = vmul.f32 %v1121, 0.5
    %v1123 = vadd.f32 %v1122, 0.5
    %v1124 = vmul.f32 %v1118, %v1003
    %v1125 = vmul.f32 %v1114, %v1119
    %v1126 = vadd.f32 %v1124, %v1125
    %v1127 = vtanh.pop %v1126
    %v1128 = vmul.f32 %v1123, %v1127
    %v1129 = vld [vmem:[%s3] sm:$0x1]
    %v1131 = vlaneseq
    %v1132 = vshrl.u32 %v1131, 7
    %v1133 = vsub.s32 0, %v1132
    %v1134 = vrot.slane %v1129, %v1133
    %v1136 = vmul.f32 %v1128, %v1134
    %1137 = vadd.xlane.f32.xlu0 %v1136
    %v1138 = vpop.xlane.xlu0 %1137
    %s1139 = sld [smem:[#allocation2]]
    %v1140 = vstv %s1139
    %v1141 = vadd.f32 %v1138, %v1140
    %vm1142 = vcmask 7168
    %1143 = vst.msk [vmem:[%s5] sm:$0xff] %vm1142, %v1141
    // Predicated region
    $region30: #{tpu_custom_call.1} parent=1 // pred_check
      _
    $region31: #{tpu_custom_call.1} parent=1 // pred_check_branch
      %1145 = sbr.rel (0) target = $region33
    $region32: #{tpu_custom_call.1} parent=1 // pred_region
      _
    $region33: #{tpu_custom_call.1} parent=1 // pred_fallthru
      _
    // Predicated region
    $region34: #{tpu_custom_call.1} parent=1 // pred_check
      _
    $region35: #{tpu_custom_call.1} parent=1 // pred_check_branch
      %1147 = sbr.rel (0) target = $region37
    $region36: #{tpu_custom_call.1} parent=1 // pred_region
      _
    $region37: #{tpu_custom_call.1} parent=1 // pred_fallthru
      _
    %1148 = vsyncpa [#allocation4], 1
    %1149 = vsyncpa [#allocation6], 1

</llo_original>
